<compile_context>
chip_gen: v7x
topology: tpu7x:2x2x1
jax: 0.10.0
libtpu: 0.0.40
codegen_flags: <defaults>
</compile_context>

<pallas_src>
import math
from functools import partial

import jax
import jax.numpy as jnp
from jax.experimental import pallas as pl
from jax.experimental.pallas import tpu as pltpu  # noqa: F401  (TPU backend assumed)


# ------------------------------------------------------------------
# Config (small, deterministic)
# ------------------------------------------------------------------
N = 2                     # batch
C = 32                    # feature channels
A = 3                     # anchors per location (3 aspect ratios, 1 size/level)
LEVEL_HW = [(16, 16), (8, 8)]
ANCHOR_SIZES = [32.0, 64.0]
ASPECT_RATIOS = [0.5, 1.0, 2.0]
IMG_H, IMG_W = 64, 64
PRE_NMS_TOP_N = {"training": 200, "testing": 100}
POST_NMS_TOP_N = {"training": 100, "testing": 50}
NMS_THRESH = 0.7          # TODO(synk): batched NMS itself is not implemented (see below)
SCORE_THRESH = 0.0
MIN_SIZE = 1e-3
BBOX_XFORM_CLIP = math.log(1000.0 / 16.0)


# ------------------------------------------------------------------
# Fused Pallas kernel: 3x3 conv + ReLU + fused cls/bbox heads + decode + sigmoid + clip
# ------------------------------------------------------------------
def _rpn_fused_kernel(patches_ref, convw_ref, convb_ref, headw_ref, headb_ref,
                      anchors_ref, out_ref, *, a, img_h, img_w):
    # patches_ref: (9C, NM) bf16  channel-major im2col, lanes = n*M + m  (NM = 640 = 5*128)
    # convw_ref:   (C, 9C)  bf16     convb_ref: (C, 1)  f32
    # headw_ref:   (5A, C)  bf16  (rows: A cls logits, then dx*A, dy*A, dw*A, dh*A)
    # headb_ref:   (5A, 1)  f32
    # anchors_ref: (4A, NM) f32  center/size form: rows ctr_x*A, ctr_y*A, w*A, h*A
    # out_ref:     (5A, NM) f32  rows 0:4A = clipped boxes (x1,y1,x2,y2 coord-major),
    #                            rows 4A:5A = sigmoid objectness.

    # 3x3 conv (pad=1) as ONE K=9C MXU contraction, bf16 inputs, f32 accumulate.
    hidden = jnp.dot(convw_ref[...], patches_ref[...],
                     preferred_element_type=jnp.float32)                # (C, NM)
    hidden = jnp.maximum(hidden + convb_ref[...], 0.0)                  # bias + ReLU (f32)

    # Fused objectness + bbox heads: one (5A, C) x (C, NM) bf16 matmul, f32 accumulate.
    head = jnp.dot(headw_ref[...], hidden.astype(jnp.bfloat16),
                   preferred_element_type=jnp.float32) + headb_ref[...]  # (5A, NM)

    obj = head[0:a]
    dx = head[a:2 * a]
    dy = head[2 * a:3 * a]
    dw = jnp.minimum(head[3 * a:4 * a], BBOX_XFORM_CLIP)
    dh = jnp.minimum(head[4 * a:5 * a], BBOX_XFORM_CLIP)

    # Anchors arrive pre-converted to center/size form (batch-invariant math hoisted).
    ctr_x = anchors_ref[0:a]
    ctr_y = anchors_ref[a:2 * a]
    ws = anchors_ref[2 * a:3 * a]
    hs = anchors_ref[3 * a:4 * a]

    pred_ctr_x = dx * ws + ctr_x
    pred_ctr_y = dy * hs + ctr_y
    half_w = 0.5 * jnp.exp(dw) * ws
    half_h = 0.5 * jnp.exp(dh) * hs

    # clip_boxes_to_image fused; each coordinate group written straight into the output slab.
    out_ref[0:a] = jnp.clip(pred_ctr_x - half_w, 0.0, img_w)
    out_ref[a:2 * a] = jnp.clip(pred_ctr_y - half_h, 0.0, img_h)
    out_ref[2 * a:3 * a] = jnp.clip(pred_ctr_x + half_w, 0.0, img_w)
    out_ref[3 * a:4 * a] = jnp.clip(pred_ctr_y + half_h, 0.0, img_h)
    out_ref[4 * a:5 * a] = jax.nn.sigmoid(obj)


def rpn_fused(patches, anchors_cm, conv_w_t, conv_b, head_w, head_b, img_h, img_w):
    """patches (9C, N*M) bf16 -> combined slab (5A, N*M) f32 (boxes rows + score rows)."""
    a5 = head_w.shape[0]
    a = a5 // 5
    nm = patches.shape[1]
    kernel = partial(_rpn_fused_kernel, a=a, img_h=float(img_h), img_w=float(img_w))
    # No grid: everything fits comfortably in VMEM (<1 MB), one kernel step, one
    # lane-dense output DMA.  Default BlockSpecs copy the full arrays into VMEM.
    out = pl.pallas_call(
        kernel,
        out_shape=jax.ShapeDtypeStruct((a5, nm), jnp.float32),
    )(patches, conv_w_t, conv_b, head_w, head_b, anchors_cm)
    return out


# ------------------------------------------------------------------
# Wrapper glue: channel-major im2col slab with the batch folded into lanes
# ------------------------------------------------------------------
def build_patches_cm(feats):
    """feats: list of (N, C, H, W) bf16 -> (9C, N*M); row = tap*C + c, lane = n*M + m."""
    per_level = []
    for x in feats:
        n, c, h, w = x.shape
        xpad = jnp.pad(x, ((0, 0), (0, 0), (1, 1), (1, 1)))
        taps = []
        for ddy in range(3):
            for ddx in range(3):
                taps.append(xpad[:, :, ddy:ddy + h, ddx:ddx + w].reshape(n, c, h * w))
        per_level.append(jnp.concatenate(taps, axis=1))        # (N, 9C, HW)
    slab = jnp.concatenate(per_level, axis=2)                  # (N, 9C, M)
    n, kc, m = slab.shape
    return slab.transpose(1, 0, 2).reshape(kc, n * m)          # (9C, N*M)


def prepare_kernel_params(params):
    """PyTorch-layout params -> kernel (channel-major, coord-major, fused, bf16) layouts."""
    c = params["conv_w"].shape[0]
    a = params["cls_w"].shape[0]
    # conv (Cout, Cin, 3, 3) -> (Cout, 9*Cin), column = (dy*3+dx)*Cin + cin
    conv_w_t = jnp.transpose(params["conv_w"], (0, 2, 3, 1)).reshape(c, 9 * c)
    conv_b = params["conv_b"].reshape(c, 1)
    # bbox head rows a*4+coord  ->  coord-major rows coord*A + a
    bb_w_cm = params["bb_w"].reshape(a, 4, c).transpose(1, 0, 2).reshape(4 * a, c)
    bb_b_cm = params["bb_b"].reshape(a, 4).transpose(1, 0).reshape(4 * a)
    head_w = jnp.concatenate([params["cls_w"].reshape(a, c), bb_w_cm], axis=0)   # (5A, C)
    head_b = jnp.concatenate([params["cls_b"].reshape(a), bb_b_cm],
                             axis=0).reshape(5 * a, 1)
    return (conv_w_t.astype(jnp.bfloat16), conv_b,
            head_w.astype(jnp.bfloat16), head_b)


# ------------------------------------------------------------------
# Anchor generator (torchvision AnchorGenerator semantics, JAX glue)
# ------------------------------------------------------------------
def cell_anchors(size, ratios):
    r = jnp.asarray(ratios, jnp.float32)
    h_ratios = jnp.sqrt(r)
    w_ratios = 1.0 / h_ratios
    ws = w_ratios * size
    hs = h_ratios * size
    return jnp.round(jnp.stack([-ws / 2, -hs / 2, ws / 2, hs / 2], axis=1))  # (A, 4)


def grid_anchors(feat_h, feat_w, stride_h, stride_w, cell):
    sx = jnp.arange(feat_w, dtype=jnp.float32) * stride_w
    sy = jnp.arange(feat_h, dtype=jnp.float32) * stride_h
    syy, sxx = jnp.meshgrid(sy, sx, indexing="ij")
    shifts = jnp.stack([sxx.reshape(-1), syy.reshape(-1),
                        sxx.reshape(-1), syy.reshape(-1)], axis=1)           # (HW, 4)
    return shifts[:, None, :] + cell[None, :, :]                             # (HW, A, 4)


def anchors_center_cm(g):
    """(HW, A, 4) x1y1x2y2 anchors -> (4A, HW) center/size coord-major rows."""
    x1, y1, x2, y2 = g[..., 0], g[..., 1], g[..., 2], g[..., 3]              # (HW, A)
    w = x2 - x1
    h = y2 - y1
    cx = x1 + 0.5 * w
    cy = y1 + 0.5 * h
    stacked = jnp.stack([cx, cy, w, h], axis=0)                              # (4, HW, A)
    return stacked.transpose(0, 2, 1).reshape(4 * g.shape[1], -1)            # (4A, HW)


# ------------------------------------------------------------------
# Full RPN forward (inference path)
# ------------------------------------------------------------------
def rpn_forward(image_hw, features_nchw, params):
    feats = list(features_nchw.values())
    n = feats[0].shape[0]
    h_img, w_img = image_hw

    # --- single channel-major im2col slab, batch folded into lanes (9C, 640) ---
    patches = build_patches_cm([f.astype(jnp.bfloat16) for f in feats])

    # --- anchors: center/size, coord-major (4A, M), tiled across the batch lanes ---
    anchors_levels = []
    num_anchors_per_level = []
    for x, size in zip(feats, ANCHOR_SIZES):
        fh, fw = x.shape[2], x.shape[3]
        hw = fh * fw
        cell = cell_anchors(size, ASPECT_RATIOS)
        g = grid_anchors(fh, fw, h_img // fh, w_img // fw, cell)             # (HW, A, 4)
        anchors_levels.append(anchors_center_cm(g))                          # (4A, HW)
        num_anchors_per_level.append(hw * A)
    anchors_m = jnp.concatenate(anchors_levels, axis=1)                      # (4A, M)
    m = anchors_m.shape[1]
    anchors_cm = jnp.tile(anchors_m, (1, n))                                 # (4A, N*M)

    conv_w_t, conv_b, head_w, head_b = prepare_kernel_params(params)

    # --- single fused Pallas call: conv + heads + decode + sigmoid + clip ---
    out = rpn_fused(patches, anchors_cm, conv_w_t, conv_b, head_w, head_b, h_img, w_img)
    boxes_cm = out[:4 * A]                                                   # (4A, N*M)
    scores_cm = out[4 * A:]                                                  # (A,  N*M)

    # --- back to torchvision anchor ordering (per level, H-major, W, then A) ---
    proposals = boxes_cm.reshape(4, A, n, m).transpose(2, 3, 1, 0).reshape(n, m * A, 4)
    scores = scores_cm.reshape(A, n, m).transpose(1, 2, 0).reshape(n, m * A)  # sigmoid probs

    # --- filter_proposals (glue) ---
    pre_nms = PRE_NMS_TOP_N["testing"]
    post_nms = POST_NMS_TOP_N["testing"]
    idx_chunks = []
    offset = 0
    for n_lvl in num_anchors_per_level:
        lvl_scores = scores[:, offset:offset + n_lvl]
        k = min(pre_nms, n_lvl)
        _, idx = jax.lax.top_k(lvl_scores, k)      # sigmoid is monotone -> same order as logits
        idx_chunks.append(idx + offset)
        offset += n_lvl
    top_idx = jnp.concatenate(idx_chunks, axis=1)                            # (N, M_sel)
    batch_idx = jnp.arange(n)[:, None]
    sel_boxes = proposals[batch_idx, top_idx]                                # (N, M_sel, 4)
    sel_scores = scores[batch_idx, top_idx]                                  # (N, M_sel)

    # remove_small_boxes + score_thresh as a validity mask (static shapes)
    ws = sel_boxes[..., 2] - sel_boxes[..., 0]
    hs = sel_boxes[..., 3] - sel_boxes[..., 1]
    valid = (ws >= MIN_SIZE) & (hs >= MIN_SIZE) & (sel_scores >= SCORE_THRESH)
    masked_scores = jnp.where(valid, sel_scores, -jnp.inf)

    # TODO(synk): box_ops.batched_nms (data-dependent, dynamic-shape suppression) has no
    # clean static-shape Pallas equivalent; we return the top post_nms_top_n proposals by
    # score among the valid ones instead.
    k_post = min(post_nms, masked_scores.shape[1])
    final_scores, keep = jax.lax.top_k(masked_scores, k_post)
    final_boxes = jnp.take_along_axis(sel_boxes, keep[..., None], axis=1)

    boxes_list = [final_boxes[i] for i in range(n)]
    scores_list = [final_scores[i] for i in range(n)]
    losses = {}  # inference mode: training-only branch (matcher/sampler/losses) not exercised
    return boxes_list, scores_list, losses


# ------------------------------------------------------------------
# Deterministic synthetic parameters (RPNHead shapes: conv3x3 C->C, cls C->A, bbox C->4A)
# ------------------------------------------------------------------
def init_params(key, c=C, a=A):
    k0, k1, k2 = jax.random.split(key, 3)
    return {
        "conv_w": jax.random.normal(k0, (c, c, 3, 3), jnp.float32) * 0.05,   # (Cout, Cin, 3, 3)
        "conv_b": jnp.zeros((c,), jnp.float32),
        "cls_w": jax.random.normal(k1, (a, c), jnp.float32) * 0.05,          # (A, C)
        "cls_b": jnp.zeros((a,), jnp.float32),
        "bb_w": jax.random.normal(k2, (4 * a, c), jnp.float32) * 0.05,       # row = a*4 + coord
        "bb_b": jnp.zeros((4 * a,), jnp.float32),
    }


if __name__ == "__main__":
    key = jax.random.PRNGKey(0)
    kf0, kf1, kp = jax.random.split(key, 3)
    features = {
        "0": jax.random.normal(kf0, (N, C, LEVEL_HW[0][0], LEVEL_HW[0][1]), jnp.float32),
        "1": jax.random.normal(kf1, (N, C, LEVEL_HW[1][0], LEVEL_HW[1][1]), jnp.float32),
    }
    params = init_params(kp)

    boxes, scores, losses = rpn_forward((IMG_H, IMG_W), features, params)
    for b, s in zip(boxes, scores):
        jax.block_until_ready(b)
        jax.block_until_ready(s)
    assert boxes[0].shape == (POST_NMS_TOP_N["testing"], 4)
    assert losses == {}
    print("KERNEL_OK")
</pallas_src>

<mosaic_0001>
module attributes {stable_mosaic.version = 11 : i64} {
  func.func @_rpn_fused_kernel(%arg0: memref<288x640xbf16, #tpu.memory_space<vmem>>, %arg1: memref<32x288xbf16, #tpu.memory_space<vmem>>, %arg2: memref<32x1xf32, #tpu.memory_space<vmem>>, %arg3: memref<15x32xbf16, #tpu.memory_space<vmem>>, %arg4: memref<15x1xf32, #tpu.memory_space<vmem>>, %arg5: memref<12x640xf32, #tpu.memory_space<vmem>>, %arg6: memref<15x640xf32, #tpu.memory_space<vmem>>) attributes {dimension_semantics = [], scalar_prefetch = 0 : i64, scratch_operands = 0 : i64, tpu.core_type = #tpu.core_type<tc>} {
    %c0 = arith.constant 0 : index
    %c0_0 = arith.constant 0 : index
    %0 = vector.load %arg1[%c0, %c0_0] : memref<32x288xbf16, #tpu.memory_space<vmem>>, vector<32x288xbf16>
    %c0_1 = arith.constant 0 : index
    %c0_2 = arith.constant 0 : index
    %1 = vector.load %arg0[%c0_1, %c0_2] : memref<288x640xbf16, #tpu.memory_space<vmem>>, vector<288x640xbf16>
    %cst = arith.constant dense<0.000000e+00> : vector<32x640xf32>
    %2 = tpu.matmul %0, %1, %cst {dimension_numbers = #tpu.dot_dimension_numbers<[1], [0], [0], [1], [0, 0, 1, 1], [], []>} : vector<32x288xbf16>, vector<288x640xbf16>, vector<32x640xf32> -> vector<32x640xf32>
    %c0_3 = arith.constant 0 : index
    %c0_4 = arith.constant 0 : index
    %3 = vector.load %arg2[%c0_3, %c0_4] : memref<32x1xf32, #tpu.memory_space<vmem>>, vector<32x1xf32>
    %4 = vector.broadcast %3 : vector<32x1xf32> to vector<32x640xf32>
    %5 = arith.addf %2, %4 : vector<32x640xf32>
    %cst_5 = arith.constant 0.000000e+00 : f32
    %6 = vector.broadcast %cst_5 : f32 to vector<32x640xf32>
    %7 = arith.maximumf %5, %6 : vector<32x640xf32>
    %c0_6 = arith.constant 0 : index
    %c0_7 = arith.constant 0 : index
    %8 = vector.load %arg3[%c0_6, %c0_7] : memref<15x32xbf16, #tpu.memory_space<vmem>>, vector<15x32xbf16>
    %9 = arith.truncf %7 : vector<32x640xf32> to vector<32x640xbf16>
    %cst_8 = arith.constant dense<0.000000e+00> : vector<15x640xf32>
    %10 = tpu.matmul %8, %9, %cst_8 {dimension_numbers = #tpu.dot_dimension_numbers<[1], [0], [0], [1], [0, 0, 1, 1], [], []>} : vector<15x32xbf16>, vector<32x640xbf16>, vector<15x640xf32> -> vector<15x640xf32>
    %c0_9 = arith.constant 0 : index
    %c0_10 = arith.constant 0 : index
    %11 = vector.load %arg4[%c0_9, %c0_10] : memref<15x1xf32, #tpu.memory_space<vmem>>, vector<15x1xf32>
    %12 = vector.broadcast %11 : vector<15x1xf32> to vector<15x640xf32>
    %13 = arith.addf %10, %12 : vector<15x640xf32>
    %14 = vector.extract_strided_slice %13 {offsets = [0, 0], sizes = [3, 640], strides = [1, 1]} : vector<15x640xf32> to vector<3x640xf32>
    %15 = vector.extract_strided_slice %13 {offsets = [3, 0], sizes = [3, 640], strides = [1, 1]} : vector<15x640xf32> to vector<3x640xf32>
    %16 = vector.extract_strided_slice %13 {offsets = [6, 0], sizes = [3, 640], strides = [1, 1]} : vector<15x640xf32> to vector<3x640xf32>
    %17 = vector.extract_strided_slice %13 {offsets = [9, 0], sizes = [3, 640], strides = [1, 1]} : vector<15x640xf32> to vector<3x640xf32>
    %cst_11 = arith.constant 4.13516665 : f32
    %18 = vector.broadcast %cst_11 : f32 to vector<3x640xf32>
    %19 = arith.minimumf %17, %18 : vector<3x640xf32>
    %20 = vector.extract_strided_slice %13 {offsets = [12, 0], sizes = [3, 640], strides = [1, 1]} : vector<15x640xf32> to vector<3x640xf32>
    %cst_12 = arith.constant 4.13516665 : f32
    %21 = vector.broadcast %cst_12 : f32 to vector<3x640xf32>
    %22 = arith.minimumf %20, %21 : vector<3x640xf32>
    %c0_13 = arith.constant 0 : index
    %c0_14 = arith.constant 0 : index
    %23 = vector.load %arg5[%c0_13, %c0_14] : memref<12x640xf32, #tpu.memory_space<vmem>>, vector<3x640xf32>
    %c3 = arith.constant 3 : index
    %c0_15 = arith.constant 0 : index
    %24 = vector.load %arg5[%c3, %c0_15] : memref<12x640xf32, #tpu.memory_space<vmem>>, vector<3x640xf32>
    %c6 = arith.constant 6 : index
    %c0_16 = arith.constant 0 : index
    %25 = vector.load %arg5[%c6, %c0_16] : memref<12x640xf32, #tpu.memory_space<vmem>>, vector<3x640xf32>
    %c9 = arith.constant 9 : index
    %c0_17 = arith.constant 0 : index
    %26 = vector.load %arg5[%c9, %c0_17] : memref<12x640xf32, #tpu.memory_space<vmem>>, vector<3x640xf32>
    %27 = arith.mulf %15, %25 : vector<3x640xf32>
    %28 = arith.addf %27, %23 : vector<3x640xf32>
    %29 = arith.mulf %16, %26 : vector<3x640xf32>
    %30 = arith.addf %29, %24 : vector<3x640xf32>
    %31 = math.exp %19 : vector<3x640xf32>
    %cst_18 = arith.constant 5.000000e-01 : f32
    %32 = vector.broadcast %cst_18 : f32 to vector<3x640xf32>
    %33 = arith.mulf %32, %31 : vector<3x640xf32>
    %34 = arith.mulf %33, %25 : vector<3x640xf32>
    %35 = math.exp %22 : vector<3x640xf32>
    %cst_19 = arith.constant 5.000000e-01 : f32
    %36 = vector.broadcast %cst_19 : f32 to vector<3x640xf32>
    %37 = arith.mulf %36, %35 : vector<3x640xf32>
    %38 = arith.mulf %37, %26 : vector<3x640xf32>
    %39 = arith.subf %28, %34 : vector<3x640xf32>
    %cst_20 = arith.constant 0.000000e+00 : f32
    %cst_21 = arith.constant 6.400000e+01 : f32
    %40 = vector.broadcast %cst_20 : f32 to vector<3x640xf32>
    %41 = arith.maximumf %40, %39 : vector<3x640xf32>
    %42 = vector.broadcast %cst_21 : f32 to vector<3x640xf32>
    %43 = arith.minimumf %42, %41 : vector<3x640xf32>
    %c0_22 = arith.constant 0 : index
    %c0_23 = arith.constant 0 : index
    %44 = vector.load %arg6[%c0_22, %c0_23] : memref<15x640xf32, #tpu.memory_space<vmem>>, vector<3x640xf32>
    tpu.vector_store %arg6[%c0_22, %c0_23], %43 {strides = array<i32>} : memref<15x640xf32, #tpu.memory_space<vmem>>, vector<3x640xf32>,
    %45 = arith.subf %30, %38 : vector<3x640xf32>
    %cst_24 = arith.constant 0.000000e+00 : f32
    %cst_25 = arith.constant 6.400000e+01 : f32
    %46 = vector.broadcast %cst_24 : f32 to vector<3x640xf32>
    %47 = arith.maximumf %46, %45 : vector<3x640xf32>
    %48 = vector.broadcast %cst_25 : f32 to vector<3x640xf32>
    %49 = arith.minimumf %48, %47 : vector<3x640xf32>
    %c3_26 = arith.constant 3 : index
    %c0_27 = arith.constant 0 : index
    %50 = vector.load %arg6[%c3_26, %c0_27] : memref<15x640xf32, #tpu.memory_space<vmem>>, vector<3x640xf32>
    tpu.vector_store %arg6[%c3_26, %c0_27], %49 {strides = array<i32>} : memref<15x640xf32, #tpu.memory_space<vmem>>, vector<3x640xf32>,
    %51 = arith.addf %28, %34 : vector<3x640xf32>
    %cst_28 = arith.constant 0.000000e+00 : f32
    %cst_29 = arith.constant 6.400000e+01 : f32
    %52 = vector.broadcast %cst_28 : f32 to vector<3x640xf32>
    %53 = arith.maximumf %52, %51 : vector<3x640xf32>
    %54 = vector.broadcast %cst_29 : f32 to vector<3x640xf32>
    %55 = arith.minimumf %54, %53 : vector<3x640xf32>
    %c6_30 = arith.constant 6 : index
    %c0_31 = arith.constant 0 : index
    %56 = vector.load %arg6[%c6_30, %c0_31] : memref<15x640xf32, #tpu.memory_space<vmem>>, vector<3x640xf32>
    tpu.vector_store %arg6[%c6_30, %c0_31], %55 {strides = array<i32>} : memref<15x640xf32, #tpu.memory_space<vmem>>, vector<3x640xf32>,
    %57 = arith.addf %30, %38 : vector<3x640xf32>
    %cst_32 = arith.constant 0.000000e+00 : f32
    %cst_33 = arith.constant 6.400000e+01 : f32
    %58 = vector.broadcast %cst_32 : f32 to vector<3x640xf32>
    %59 = arith.maximumf %58, %57 : vector<3x640xf32>
    %60 = vector.broadcast %cst_33 : f32 to vector<3x640xf32>
    %61 = arith.minimumf %60, %59 : vector<3x640xf32>
    %c9_34 = arith.constant 9 : index
    %c0_35 = arith.constant 0 : index
    %62 = vector.load %arg6[%c9_34, %c0_35] : memref<15x640xf32, #tpu.memory_space<vmem>>, vector<3x640xf32>
    tpu.vector_store %arg6[%c9_34, %c0_35], %61 {strides = array<i32>} : memref<15x640xf32, #tpu.memory_space<vmem>>, vector<3x640xf32>,
    %63 = arith.negf %14 : vector<3x640xf32>
    %64 = math.exp %63 : vector<3x640xf32>
    %cst_36 = arith.constant 1.000000e+00 : f32
    %65 = vector.broadcast %cst_36 : f32 to vector<3x640xf32>
    %66 = arith.addf %65, %64 : vector<3x640xf32>
    %67 = arith.divf %65, %66 : vector<3x640xf32>
    %c12 = arith.constant 12 : index
    %c0_37 = arith.constant 0 : index
    %68 = vector.load %arg6[%c12, %c0_37] : memref<15x640xf32, #tpu.memory_space<vmem>>, vector<3x640xf32>
    tpu.vector_store %arg6[%c12, %c0_37], %67 {strides = array<i32>} : memref<15x640xf32, #tpu.memory_space<vmem>>, vector<3x640xf32>,
    return
  }
}

</mosaic_0001>

<llo_original>
// kernel: tpu_custom_call.1
$region0: #{tpu_custom_call.1}
  #allocation0 [shape = 'u32[]', space=smem, size = 0x4, offset = 0x4, fixed_abs, tag = 'smem constant byte address 0x4 - core index']
  #allocation1 [shape = 'u32[144,128]{1,0:T(1,128)}', space=vmem, size = 0x12000, scoped, tag = 'internal scratch']
  %s0 = inlined_call_operand.hbm [shape: bf16[288,640], index: 0, kind: input, shape index: {}]
  %s1 = inlined_call_operand.vmem [shape: bf16[32,288], index: 1, kind: input, shape index: {}]
  %s2 = inlined_call_operand.vmem [shape: f32[32,1], index: 2, kind: input, shape index: {}]
  %s3 = inlined_call_operand.vmem [shape: bf16[15,32], index: 3, kind: input, shape index: {}]
  %s4 = inlined_call_operand.vmem [shape: f32[15,1], index: 4, kind: input, shape index: {}]
  %s5 = inlined_call_operand.hbm [shape: f32[12,640], index: 5, kind: input, shape index: {}]
  %s6 = inlined_call_operand.hbm [shape: f32[15,640], index: 6, kind: output, shape index: {}]
  %s7 = sld [smem:[#allocation0]]
  $region42: #{tpu_custom_call.1} parent=0
    _
  %s9 = ssub.s32 1, %s7
  %s10 = scalar_select 0, %s9, %s7
  $region1: #{tpu_custom_call.1} parent=0
    #allocation2 [shape = 'u8[368640]{0}', space=vmem, size = 0x5a000, scoped, tag = 'input window, operand 0, single buffered']
    #allocation3 [shape = 's32[1]{0}', space=sflag, size = 0x4, scoped, tag = 'scoped memory for tpu_custom_call.1']
    #allocation4 [shape = 's32[1]{0}', space=sflag, size = 0x4, scoped, tag = 'scoped memory for tpu_custom_call.1']
    #allocation5 [shape = 'u8[40960]{0}', space=vmem, size = 0xa000, scoped, tag = 'input window, operand 5, single buffered']
    #allocation6 [shape = 's32[1]{0}', space=sflag, size = 0x4, scoped, tag = 'scoped memory for tpu_custom_call.1']
    #allocation7 [shape = 'u8[40960]{0}', space=vmem, size = 0xa000, scoped, tag = 'output window, operand 0, single buffered']
    %11 = vsyncpa [#allocation3], 0
    %12 = vsyncpa [#allocation6], 0
    %13 = vsyncpa [#allocation4], 0
    // Predicated region
    $region2: #{tpu_custom_call.1} parent=1 // pred_check
      _
    $region3: #{tpu_custom_call.1} parent=1 // pred_check_branch
      %15 = sbr.rel (0) target = $region5
    $region4: #{tpu_custom_call.1} parent=1 // pred_region
      %s17 = ssub.s32 11520, 11520
      %18 = vsyncadd [#allocation3], %s17
      %s19 = sshll.u32 [#allocation2], 4
      %s20 = int_to_ptr.vmem [resolvable:$true] %s19
      %25 = dma.hbm_to_vmem [thread:$0]  %s0, 11520, %s20, [#allocation3], 320, 320, 20
    $region5: #{tpu_custom_call.1} parent=1 // pred_fallthru
      _
    // Predicated region
    $region6: #{tpu_custom_call.1} parent=1 // pred_check
      _
    $region7: #{tpu_custom_call.1} parent=1 // pred_check_branch
      %27 = sbr.rel (0) target = $region9
    $region8: #{tpu_custom_call.1} parent=1 // pred_region
      _
    $region9: #{tpu_custom_call.1} parent=1 // pred_fallthru
      _
    // Predicated region
    $region10: #{tpu_custom_call.1} parent=1 // pred_check
      _
    $region11: #{tpu_custom_call.1} parent=1 // pred_check_branch
      %29 = sbr.rel (0) target = $region13
    $region12: #{tpu_custom_call.1} parent=1 // pred_region
      _
    $region13: #{tpu_custom_call.1} parent=1 // pred_fallthru
      _
    // Predicated region
    $region14: #{tpu_custom_call.1} parent=1 // pred_check
      _
    $region15: #{tpu_custom_call.1} parent=1 // pred_check_branch
      %31 = sbr.rel (0) target = $region17
    $region16: #{tpu_custom_call.1} parent=1 // pred_region
      _
    $region17: #{tpu_custom_call.1} parent=1 // pred_fallthru
      _
    // Predicated region
    $region18: #{tpu_custom_call.1} parent=1 // pred_check
      _
    $region19: #{tpu_custom_call.1} parent=1 // pred_check_branch
      %33 = sbr.rel (0) target = $region21
    $region20: #{tpu_custom_call.1} parent=1 // pred_region
      _
    $region21: #{tpu_custom_call.1} parent=1 // pred_fallthru
      _
    // Predicated region
    $region22: #{tpu_custom_call.1} parent=1 // pred_check
      _
    $region23: #{tpu_custom_call.1} parent=1 // pred_check_branch
      %35 = sbr.rel (0) target = $region25
    $region24: #{tpu_custom_call.1} parent=1 // pred_region
      %s37 = ssub.s32 1280, 1280
      %38 = vsyncadd [#allocation6], %s37
      %s39 = sshll.u32 [#allocation5], 4
      %s40 = int_to_ptr.vmem [resolvable:$true] %s39
      %45 = dma.hbm_to_vmem [thread:$0]  %s5, 1280, %s40, [#allocation6], 640, 640, 40
    $region25: #{tpu_custom_call.1} parent=1 // pred_fallthru
      _
    // Predicated region
    $region26: #{tpu_custom_call.1} parent=1 // pred_check
      _
    $region27: #{tpu_custom_call.1} parent=1 // pred_check_branch
      %47 = sbr.rel (0) target = $region29
    $region28: #{tpu_custom_call.1} parent=1 // pred_region
      %48 = dma.done [#allocation3], 11520
    $region29: #{tpu_custom_call.1} parent=1 // pred_fallthru
      _
    // Predicated region
    $region30: #{tpu_custom_call.1} parent=1 // pred_check
      _
    $region31: #{tpu_custom_call.1} parent=1 // pred_check_branch
      %50 = sbr.rel (0) target = $region33
    $region32: #{tpu_custom_call.1} parent=1 // pred_region
      %51 = dma.done [#allocation6], 1280
    $region33: #{tpu_custom_call.1} parent=1 // pred_fallthru
      _
    %v53 = vld [vmem:[%s1] sm:$0xff]
    %v54 = vld [vmem:[%s1 + $0x8] sm:$0xf]
    %v55 = vld [vmem:[%s1 + $0xc] sm:$0xff]
    %v56 = vld [vmem:[%s1 + $0x14] sm:$0xf]
    %v57 = vld [vmem:[%s1 + $0x18] sm:$0xff]
    %v58 = vld [vmem:[%s1 + $0x20] sm:$0xf]
    %v59 = vld [vmem:[%s1 + $0x24] sm:$0xff]
    %v60 = vld [vmem:[%s1 + $0x2c] sm:$0xf]
    %v61 = vld [vmem:[#allocation2] sm:$0xff]
    %v62 = vld [vmem:[#allocation2 + $0x8] sm:$0xff]
    %v63 = vld [vmem:[#allocation2 + $0x10] sm:$0xf]
    %v64 = vld [vmem:[#allocation2 + $0x14] sm:$0xff]
    %v65 = vld [vmem:[#allocation2 + $0x1c] sm:$0xff]
    %v66 = vld [vmem:[#allocation2 + $0x24] sm:$0xf]
    %v67 = vld [vmem:[#allocation2 + $0x28] sm:$0xff]
    %v68 = vld [vmem:[#allocation2 + $0x30] sm:$0xff]
    %v69 = vld [vmem:[#allocation2 + $0x38] sm:$0xf]
    %v70 = vld [vmem:[#allocation2 + $0x3c] sm:$0xff]
    %v71 = vld [vmem:[#allocation2 + $0x44] sm:$0xff]
    %v72 = vld [vmem:[#allocation2 + $0x4c] sm:$0xf]
    %v73 = vld [vmem:[#allocation2 + $0x50] sm:$0xff]
    %v74 = vld [vmem:[#allocation2 + $0x58] sm:$0xff]
    %v75 = vld [vmem:[#allocation2 + $0x60] sm:$0xf]
    %v76 = vld [vmem:[#allocation2 + $0x64] sm:$0xff]
    %v77 = vld [vmem:[#allocation2 + $0x6c] sm:$0xff]
    %v78 = vld [vmem:[#allocation2 + $0x74] sm:$0xf]
    %v79 = vld [vmem:[#allocation2 + $0x78] sm:$0xff]
    %v80 = vld [vmem:[#allocation2 + $0x80] sm:$0xff]
    %v81 = vld [vmem:[#allocation2 + $0x88] sm:$0xf]
    %v82 = vld [vmem:[#allocation2 + $0x8c] sm:$0xff]
    %v83 = vld [vmem:[#allocation2 + $0x94] sm:$0xff]
    %v84 = vld [vmem:[#allocation2 + $0x9c] sm:$0xf]
    %v85 = vld [vmem:[#allocation2 + $0xa0] sm:$0xff]
    %v86 = vld [vmem:[#allocation2 + $0xa8] sm:$0xff]
    %v87 = vld [vmem:[#allocation2 + $0xb0] sm:$0xf]
    %v88 = vld [vmem:[#allocation2 + $0xb4] sm:$0xff]
    %v89 = vld [vmem:[#allocation2 + $0xbc] sm:$0xff]
    %v90 = vld [vmem:[#allocation2 + $0xc4] sm:$0xf]
    %v91 = vld [vmem:[#allocation2 + $0xc8] sm:$0xff]
    %v92 = vld [vmem:[#allocation2 + $0xd0] sm:$0xff]
    %v93 = vld [vmem:[#allocation2 + $0xd8] sm:$0xf]
    %v94 = vld [vmem:[#allocation2 + $0xdc] sm:$0xff]
    %v95 = vld [vmem:[#allocation2 + $0xe4] sm:$0xff]
    %v96 = vld [vmem:[#allocation2 + $0xec] sm:$0xf]
    %v97 = vld [vmem:[#allocation2 + $0xf0] sm:$0xff]
    %v98 = vld [vmem:[#allocation2 + $0xf8] sm:$0xff]
    %v99 = vld [vmem:[#allocation2 + $0x100] sm:$0xf]
    %v100 = vld [vmem:[#allocation2 + $0x104] sm:$0xff]
    %v101 = vld [vmem:[#allocation2 + $0x10c] sm:$0xff]
    %v102 = vld [vmem:[#allocation2 + $0x114] sm:$0xf]
    %v103 = vld [vmem:[#allocation2 + $0x118] sm:$0xff]
    %v104 = vld [vmem:[#allocation2 + $0x120] sm:$0xff]
    %v105 = vld [vmem:[#allocation2 + $0x128] sm:$0xf]
    %v106 = vld [vmem:[#allocation2 + $0x12c] sm:$0xff]
    %v107 = vld [vmem:[#allocation2 + $0x134] sm:$0xff]
    %v108 = vld [vmem:[#allocation2 + $0x13c] sm:$0xf]
    %v109 = vld [vmem:[#allocation2 + $0x140] sm:$0xff]
    %v110 = vld [vmem:[#allocation2 + $0x148] sm:$0xff]
    %v111 = vld [vmem:[#allocation2 + $0x150] sm:$0xf]
    %v112 = vld [vmem:[#allocation2 + $0x154] sm:$0xff]
    %v113 = vld [vmem:[#allocation2 + $0x15c] sm:$0xff]
    %v114 = vld [vmem:[#allocation2 + $0x164] sm:$0xf]
    %v115 = vld [vmem:[#allocation2 + $0x168] sm:$0xff]
    %v116 = vld [vmem:[#allocation2 + $0x170] sm:$0xff]
    %v117 = vld [vmem:[#allocation2 + $0x178] sm:$0xf]
    %v118 = vld [vmem:[#allocation2 + $0x17c] sm:$0xff]
    %v119 = vld [vmem:[#allocation2 + $0x184] sm:$0xff]
    %v120 = vld [vmem:[#allocation2 + $0x18c] sm:$0xf]
    %v121 = vld [vmem:[#allocation2 + $0x190] sm:$0xff]
    %v122 = vld [vmem:[#allocation2 + $0x198] sm:$0xff]
    %v123 = vld [vmem:[#allocation2 + $0x1a0] sm:$0xf]
    %v124 = vld [vmem:[#allocation2 + $0x1a4] sm:$0xff]
    %v125 = vld [vmem:[#allocation2 + $0x1ac] sm:$0xff]
    %v126 = vld [vmem:[#allocation2 + $0x1b4] sm:$0xf]
    %v127 = vld [vmem:[#allocation2 + $0x1b8] sm:$0xff]
    %v128 = vld [vmem:[#allocation2 + $0x1c0] sm:$0xff]
    %v129 = vld [vmem:[#allocation2 + $0x1c8] sm:$0xf]
    %v130 = vld [vmem:[#allocation2 + $0x1cc] sm:$0xff]
    %v131 = vld [vmem:[#allocation2 + $0x1d4] sm:$0xff]
    %v132 = vld [vmem:[#allocation2 + $0x1dc] sm:$0xf]
    %v133 = vld [vmem:[#allocation2 + $0x1e0] sm:$0xff]
    %v134 = vld [vmem:[#allocation2 + $0x1e8] sm:$0xff]
    %v135 = vld [vmem:[#allocation2 + $0x1f0] sm:$0xf]
    %v136 = vld [vmem:[#allocation2 + $0x1f4] sm:$0xff]
    %v137 = vld [vmem:[#allocation2 + $0x1fc] sm:$0xff]
    %v138 = vld [vmem:[#allocation2 + $0x204] sm:$0xf]
    %v139 = vld [vmem:[#allocation2 + $0x208] sm:$0xff]
    %v140 = vld [vmem:[#allocation2 + $0x210] sm:$0xff]
    %v141 = vld [vmem:[#allocation2 + $0x218] sm:$0xf]
    %v142 = vld [vmem:[#allocation2 + $0x21c] sm:$0xff]
    %v143 = vld [vmem:[#allocation2 + $0x224] sm:$0xff]
    %v144 = vld [vmem:[#allocation2 + $0x22c] sm:$0xf]
    %v145 = vld [vmem:[#allocation2 + $0x230] sm:$0xff]
    %v146 = vld [vmem:[#allocation2 + $0x238] sm:$0xff]
    %v147 = vld [vmem:[#allocation2 + $0x240] sm:$0xf]
    %v148 = vld [vmem:[#allocation2 + $0x244] sm:$0xff]
    %v149 = vld [vmem:[#allocation2 + $0x24c] sm:$0xff]
    %v150 = vld [vmem:[#allocation2 + $0x254] sm:$0xf]
    %v151 = vld [vmem:[#allocation2 + $0x258] sm:$0xff]
    %v152 = vld [vmem:[#allocation2 + $0x260] sm:$0xff]
    %v153 = vld [vmem:[#allocation2 + $0x268] sm:$0xf]
    %v154 = vld [vmem:[#allocation2 + $0x26c] sm:$0xff]
    %v155 = vld [vmem:[#allocation2 + $0x274] sm:$0xff]
    %v156 = vld [vmem:[#allocation2 + $0x27c] sm:$0xf]
    %v157 = vld [vmem:[#allocation2 + $0x280] sm:$0xff]
    %v158 = vld [vmem:[#allocation2 + $0x288] sm:$0xff]
    %v159 = vld [vmem:[#allocation2 + $0x290] sm:$0xf]
    %v160 = vld [vmem:[#allocation2 + $0x294] sm:$0xff]
    %v161 = vld [vmem:[#allocation2 + $0x29c] sm:$0xff]
    %v162 = vld [vmem:[#allocation2 + $0x2a4] sm:$0xf]
    %v163 = vld [vmem:[#allocation2 + $0x2a8] sm:$0xff]
    %v164 = vld [vmem:[#allocation2 + $0x2b0] sm:$0xff]
    %v165 = vld [vmem:[#allocation2 + $0x2b8] sm:$0xf]
    %v166 = vld [vmem:[#allocation2 + $0x2bc] sm:$0xff]
    %v167 = vld [vmem:[#allocation2 + $0x2c4] sm:$0xff]
    %v168 = vld [vmem:[#allocation2 + $0x2cc] sm:$0xf]
    %v169 = vld [vmem:[%s2] sm:$0xff]
    %v170 = vld [vmem:[%s2 + $0x8] sm:$0xff]
    %v171 = vld [vmem:[%s2 + $0x10] sm:$0xff]
    %v172 = vld [vmem:[%s2 + $0x18] sm:$0xff]
    %174 = vset.pattern.permute.xlu0 0
    %175 = vperm.xlu0 %174, %v169
    %v176 = vpop.permute.xlu0 %175
    %179 = vset.pattern.permute.xlu0 0
    %180 = vperm.xlu0 %179, %v170
    %v181 = vpop.permute.xlu0 %180
    %184 = vset.pattern.permute.xlu0 0
    %185 = vperm.xlu0 %184, %v171
    %v186 = vpop.permute.xlu0 %185
    %189 = vset.pattern.permute.xlu0 0
    %190 = vperm.xlu0 %189, %v172
    %v191 = vpop.permute.xlu0 %190
    %v201 = vunpack.c.l.b16 %v53
    %v202 = vunpack.c.h.b16 %v53
    %v203 = vunpack.c.l.b16 %v54
    %v204 = vunpack.c.l.b16 %v55
    %v205 = vunpack.c.h.b16 %v55
    %v206 = vunpack.c.l.b16 %v56
    %v207 = vunpack.c.l.b16 %v57
    %v208 = vunpack.c.h.b16 %v57
    %v209 = vunpack.c.l.b16 %v58
    %v210 = vunpack.c.l.b16 %v59
    %v211 = vunpack.c.h.b16 %v59
    %v212 = vunpack.c.l.b16 %v60
    %v213 = vpack.c.b16 %v204, %v201
    %v214 = vpack.c.b16 %v205, %v202
    %v215 = vpack.c.b16 %v206, %v203
    %v216 = vpack.c.b16 %v210, %v207
    %v217 = vpack.c.b16 %v211, %v208
    %v218 = vpack.c.b16 %v212, %v209
    %v331 = vunpack.c.l.b16 %v61
    %v332 = vunpack.c.h.b16 %v61
    %v333 = vunpack.c.l.b16 %v62
    %v334 = vunpack.c.h.b16 %v62
    %v335 = vunpack.c.l.b16 %v63
    %v336 = vunpack.c.l.b16 %v64
    %v337 = vunpack.c.h.b16 %v64
    %v338 = vunpack.c.l.b16 %v65
    %v339 = vunpack.c.h.b16 %v65
    %v340 = vunpack.c.l.b16 %v66
    %v341 = vunpack.c.l.b16 %v67
    %v342 = vunpack.c.h.b16 %v67
    %v343 = vunpack.c.l.b16 %v68
    %v344 = vunpack.c.h.b16 %v68
    %v345 = vunpack.c.l.b16 %v69
    %v346 = vunpack.c.l.b16 %v70
    %v347 = vunpack.c.h.b16 %v70
    %v348 = vunpack.c.l.b16 %v71
    %v349 = vunpack.c.h.b16 %v71
    %v350 = vunpack.c.l.b16 %v72
    %v351 = vunpack.c.l.b16 %v73
    %v352 = vunpack.c.h.b16 %v73
    %v353 = vunpack.c.l.b16 %v74
    %v354 = vunpack.c.h.b16 %v74
    %v355 = vunpack.c.l.b16 %v75
    %v356 = vunpack.c.l.b16 %v76
    %v357 = vunpack.c.h.b16 %v76
    %v358 = vunpack.c.l.b16 %v77
    %v359 = vunpack.c.h.b16 %v77
    %v360 = vunpack.c.l.b16 %v78
    %v361 = vunpack.c.l.b16 %v79
    %v362 = vunpack.c.h.b16 %v79
    %v363 = vunpack.c.l.b16 %v80
    %v364 = vunpack.c.h.b16 %v80
    %v365 = vunpack.c.l.b16 %v81
    %v366 = vunpack.c.l.b16 %v82
    %v367 = vunpack.c.h.b16 %v82
    %v368 = vunpack.c.l.b16 %v83
    %v369 = vunpack.c.h.b16 %v83
    %v370 = vunpack.c.l.b16 %v84
    %v371 = vunpack.c.l.b16 %v85
    %v372 = vunpack.c.h.b16 %v85
    %v373 = vunpack.c.l.b16 %v86
    %v374 = vunpack.c.h.b16 %v86
    %v375 = vunpack.c.l.b16 %v87
    %v376 = vunpack.c.l.b16 %v88
    %v377 = vunpack.c.h.b16 %v88
    %v378 = vunpack.c.l.b16 %v89
    %v379 = vunpack.c.h.b16 %v89
    %v380 = vunpack.c.l.b16 %v90
    %v381 = vunpack.c.l.b16 %v91
    %v382 = vunpack.c.h.b16 %v91
    %v383 = vunpack.c.l.b16 %v92
    %v384 = vunpack.c.h.b16 %v92
    %v385 = vunpack.c.l.b16 %v93
    %v386 = vunpack.c.l.b16 %v94
    %v387 = vunpack.c.h.b16 %v94
    %v388 = vunpack.c.l.b16 %v95
    %v389 = vunpack.c.h.b16 %v95
    %v390 = vunpack.c.l.b16 %v96
    %v391 = vunpack.c.l.b16 %v97
    %v392 = vunpack.c.h.b16 %v97
    %v393 = vunpack.c.l.b16 %v98
    %v394 = vunpack.c.h.b16 %v98
    %v395 = vunpack.c.l.b16 %v99
    %v396 = vunpack.c.l.b16 %v100
    %v397 = vunpack.c.h.b16 %v100
    %v398 = vunpack.c.l.b16 %v101
    %v399 = vunpack.c.h.b16 %v101
    %v400 = vunpack.c.l.b16 %v102
    %v401 = vunpack.c.l.b16 %v103
    %v402 = vunpack.c.h.b16 %v103
    %v403 = vunpack.c.l.b16 %v104
    %v404 = vunpack.c.h.b16 %v104
    %v405 = vunpack.c.l.b16 %v105
    %v406 = vunpack.c.l.b16 %v106
    %v407 = vunpack.c.h.b16 %v106
    %v408 = vunpack.c.l.b16 %v107
    %v409 = vunpack.c.h.b16 %v107
    %v410 = vunpack.c.l.b16 %v108
    %v411 = vunpack.c.l.b16 %v109
    %v412 = vunpack.c.h.b16 %v109
    %v413 = vunpack.c.l.b16 %v110
    %v414 = vunpack.c.h.b16 %v110
    %v415 = vunpack.c.l.b16 %v111
    %v416 = vunpack.c.l.b16 %v112
    %v417 = vunpack.c.h.b16 %v112
    %v418 = vunpack.c.l.b16 %v113
    %v419 = vunpack.c.h.b16 %v113
    %v420 = vunpack.c.l.b16 %v114
    %v421 = vunpack.c.l.b16 %v115
    %v422 = vunpack.c.h.b16 %v115
    %v423 = vunpack.c.l.b16 %v116
    %v424 = vunpack.c.h.b16 %v116
    %v425 = vunpack.c.l.b16 %v117
    %v426 = vunpack.c.l.b16 %v118
    %v427 = vunpack.c.h.b16 %v118
    %v428 = vunpack.c.l.b16 %v119
    %v429 = vunpack.c.h.b16 %v119
    %v430 = vunpack.c.l.b16 %v120
    %v431 = vunpack.c.l.b16 %v121
    %v432 = vunpack.c.h.b16 %v121
    %v433 = vunpack.c.l.b16 %v122
    %v434 = vunpack.c.h.b16 %v122
    %v435 = vunpack.c.l.b16 %v123
    %v436 = vunpack.c.l.b16 %v124
    %v437 = vunpack.c.h.b16 %v124
    %v438 = vunpack.c.l.b16 %v125
    %v439 = vunpack.c.h.b16 %v125
    %v440 = vunpack.c.l.b16 %v126
    %v441 = vunpack.c.l.b16 %v127
    %v442 = vunpack.c.h.b16 %v127
    %v443 = vunpack.c.l.b16 %v128
    %v444 = vunpack.c.h.b16 %v128
    %v445 = vunpack.c.l.b16 %v129
    %v446 = vunpack.c.l.b16 %v130
    %v447 = vunpack.c.h.b16 %v130
    %v448 = vunpack.c.l.b16 %v131
    %v449 = vunpack.c.h.b16 %v131
    %v450 = vunpack.c.l.b16 %v132
    %v451 = vunpack.c.l.b16 %v133
    %v452 = vunpack.c.h.b16 %v133
    %v453 = vunpack.c.l.b16 %v134
    %v454 = vunpack.c.h.b16 %v134
    %v455 = vunpack.c.l.b16 %v135
    %v456 = vunpack.c.l.b16 %v136
    %v457 = vunpack.c.h.b16 %v136
    %v458 = vunpack.c.l.b16 %v137
    %v459 = vunpack.c.h.b16 %v137
    %v460 = vunpack.c.l.b16 %v138
    %v461 = vunpack.c.l.b16 %v139
    %v462 = vunpack.c.h.b16 %v139
    %v463 = vunpack.c.l.b16 %v140
    %v464 = vunpack.c.h.b16 %v140
    %v465 = vunpack.c.l.b16 %v141
    %v466 = vunpack.c.l.b16 %v142
    %v467 = vunpack.c.h.b16 %v142
    %v468 = vunpack.c.l.b16 %v143
    %v469 = vunpack.c.h.b16 %v143
    %v470 = vunpack.c.l.b16 %v144
    %v471 = vunpack.c.l.b16 %v145
    %v472 = vunpack.c.h.b16 %v145
    %v473 = vunpack.c.l.b16 %v146
    %v474 = vunpack.c.h.b16 %v146
    %v475 = vunpack.c.l.b16 %v147
    %v476 = vunpack.c.l.b16 %v148
    %v477 = vunpack.c.h.b16 %v148
    %v478 = vunpack.c.l.b16 %v149
    %v479 = vunpack.c.h.b16 %v149
    %v480 = vunpack.c.l.b16 %v150
    %v481 = vunpack.c.l.b16 %v151
    %v482 = vunpack.c.h.b16 %v151
    %v483 = vunpack.c.l.b16 %v152
    %v484 = vunpack.c.h.b16 %v152
    %v485 = vunpack.c.l.b16 %v153
    %v486 = vunpack.c.l.b16 %v154
    %v487 = vunpack.c.h.b16 %v154
    %v488 = vunpack.c.l.b16 %v155
    %v489 = vunpack.c.h.b16 %v155
    %v490 = vunpack.c.l.b16 %v156
    %v491 = vunpack.c.l.b16 %v157
    %v492 = vunpack.c.h.b16 %v157
    %v493 = vunpack.c.l.b16 %v158
    %v494 = vunpack.c.h.b16 %v158
    %v495 = vunpack.c.l.b16 %v159
    %v496 = vunpack.c.l.b16 %v160
    %v497 = vunpack.c.h.b16 %v160
    %v498 = vunpack.c.l.b16 %v161
    %v499 = vunpack.c.h.b16 %v161
    %v500 = vunpack.c.l.b16 %v162
    %v501 = vunpack.c.l.b16 %v163
    %v502 = vunpack.c.h.b16 %v163
    %v503 = vunpack.c.l.b16 %v164
    %v504 = vunpack.c.h.b16 %v164
    %v505 = vunpack.c.l.b16 %v165
    %v506 = vunpack.c.l.b16 %v166
    %v507 = vunpack.c.h.b16 %v166
    %v508 = vunpack.c.l.b16 %v167
    %v509 = vunpack.c.h.b16 %v167
    %v510 = vunpack.c.l.b16 %v168
    %v511 = vpack.c.b16 %v336, %v331
    %v512 = vpack.c.b16 %v337, %v332
    %v513 = vpack.c.b16 %v338, %v333
    %v514 = vpack.c.b16 %v339, %v334
    %v515 = vpack.c.b16 %v340, %v335
    %v516 = vpack.c.b16 %v346, %v341
    %v517 = vpack.c.b16 %v347, %v342
    %v518 = vpack.c.b16 %v348, %v343
    %v519 = vpack.c.b16 %v349, %v344
    %v520 = vpack.c.b16 %v350, %v345
    %v521 = vpack.c.b16 %v356, %v351
    %v522 = vpack.c.b16 %v357, %v352
    %v523 = vpack.c.b16 %v358, %v353
    %v524 = vpack.c.b16 %v359, %v354
    %v525 = vpack.c.b16 %v360, %v355
    %v526 = vpack.c.b16 %v366, %v361
    %v527 = vpack.c.b16 %v367, %v362
    %v528 = vpack.c.b16 %v368, %v363
    %v529 = vpack.c.b16 %v369, %v364
    %v530 = vpack.c.b16 %v370, %v365
    %v531 = vpack.c.b16 %v376, %v371
    %v532 = vpack.c.b16 %v377, %v372
    %v533 = vpack.c.b16 %v378, %v373
    %v534 = vpack.c.b16 %v379, %v374
    %v535 = vpack.c.b16 %v380, %v375
    %v536 = vpack.c.b16 %v386, %v381
    %v537 = vpack.c.b16 %v387, %v382
    %v538 = vpack.c.b16 %v388, %v383
    %v539 = vpack.c.b16 %v389, %v384
    %v540 = vpack.c.b16 %v390, %v385
    %v541 = vpack.c.b16 %v396, %v391
    %v542 = vpack.c.b16 %v397, %v392
    %v543 = vpack.c.b16 %v398, %v393
    %v544 = vpack.c.b16 %v399, %v394
    %v545 = vpack.c.b16 %v400, %v395
    %v546 = vpack.c.b16 %v406, %v401
    %v547 = vpack.c.b16 %v407, %v402
    %v548 = vpack.c.b16 %v408, %v403
    %v549 = vpack.c.b16 %v409, %v404
    %v550 = vpack.c.b16 %v410, %v405
    %v551 = vpack.c.b16 %v416, %v411
    %v552 = vpack.c.b16 %v417, %v412
    %v553 = vpack.c.b16 %v418, %v413
    %v554 = vpack.c.b16 %v419, %v414
    %v555 = vpack.c.b16 %v420, %v415
    %v556 = vpack.c.b16 %v426, %v421
    %v557 = vpack.c.b16 %v427, %v422
    %v558 = vpack.c.b16 %v428, %v423
    %v559 = vpack.c.b16 %v429, %v424
    %v560 = vpack.c.b16 %v430, %v425
    %v561 = vpack.c.b16 %v436, %v431
    %v562 = vpack.c.b16 %v437, %v432
    %v563 = vpack.c.b16 %v438, %v433
    %v564 = vpack.c.b16 %v439, %v434
    %v565 = vpack.c.b16 %v440, %v435
    %v566 = vpack.c.b16 %v446, %v441
    %v567 = vpack.c.b16 %v447, %v442
    %v568 = vpack.c.b16 %v448, %v443
    %v569 = vpack.c.b16 %v449, %v444
    %v570 = vpack.c.b16 %v450, %v445
    %v571 = vpack.c.b16 %v456, %v451
    %v572 = vpack.c.b16 %v457, %v452
    %v573 = vpack.c.b16 %v458, %v453
    %v574 = vpack.c.b16 %v459, %v454
    %v575 = vpack.c.b16 %v460, %v455
    %v576 = vpack.c.b16 %v466, %v461
    %v577 = vpack.c.b16 %v467, %v462
    %v578 = vpack.c.b16 %v468, %v463
    %v579 = vpack.c.b16 %v469, %v464
    %v580 = vpack.c.b16 %v470, %v465
    %v581 = vpack.c.b16 %v476, %v471
    %v582 = vpack.c.b16 %v477, %v472
    %v583 = vpack.c.b16 %v478, %v473
    %v584 = vpack.c.b16 %v479, %v474
    %v585 = vpack.c.b16 %v480, %v475
    %v586 = vpack.c.b16 %v486, %v481
    %v587 = vpack.c.b16 %v487, %v482
    %v588 = vpack.c.b16 %v488, %v483
    %v589 = vpack.c.b16 %v489, %v484
    %v590 = vpack.c.b16 %v490, %v485
    %v591 = vpack.c.b16 %v496, %v491
    %v592 = vpack.c.b16 %v497, %v492
    %v593 = vpack.c.b16 %v498, %v493
    %v594 = vpack.c.b16 %v499, %v494
    %v595 = vpack.c.b16 %v500, %v495
    %v596 = vpack.c.b16 %v506, %v501
    %v597 = vpack.c.b16 %v507, %v502
    %v598 = vpack.c.b16 %v508, %v503
    %v599 = vpack.c.b16 %v509, %v504
    %v600 = vpack.c.b16 %v510, %v505
    %vm691 = vcmask 261120
    %v693 = vsel %vm691, %v215, 0
    %v696 = vsel %vm691, %v218, 0
    %698 = vmatprep.subr.bf16.mxu0 %v512
    %699 = vmatpush1.bf16.msra.mxu0 %v511
    %700 = vmatprep.subr.bf16.mxu0 %v517
    %701 = vmatpush1.bf16.msra.mxu0 %v516
    %702 = vmatprep.subr.bf16.mxu0 %v522
    %703 = vmatpush1.bf16.msra.mxu0 %v521
    %704 = vmatprep.subr.bf16.mxu0 %v527
    %705 = vmatpush1.bf16.msra.mxu0 %v526
    %706 = vmatprep.subr.bf16.mxu0 %v532
    %707 = vmatpush1.bf16.msra.mxu0 %v531
    %708 = vmatprep.subr.bf16.mxu0 %v537
    %709 = vmatpush1.bf16.msra.mxu0 %v536
    %710 = vmatprep.subr.bf16.mxu0 %v542
    %711 = vmatpush1.bf16.msra.mxu0 %v541
    %712 = vmatprep.subr.bf16.mxu0 %v547
    %713 = vmatpush1.bf16.msra.mxu0 %v546
    %714 = vmatprep.subr.bf16.mxu0 %v552
    %715 = vmatpush1.bf16.msra.mxu0 %v551
    %716 = vmatprep.subr.bf16.mxu0 %v557
    %717 = vmatpush1.bf16.msra.mxu0 %v556
    %718 = vmatprep.subr.bf16.mxu0 %v562
    %719 = vmatpush1.bf16.msra.mxu0 %v561
    %720 = vmatprep.subr.bf16.mxu0 %v567
    %721 = vmatpush1.bf16.msra.mxu0 %v566
    %722 = vmatprep.subr.bf16.mxu0 %v572
    %723 = vmatpush1.bf16.msra.mxu0 %v571
    %724 = vmatprep.subr.bf16.mxu0 %v577
    %725 = vmatpush1.bf16.msra.mxu0 %v576
    %726 = vmatprep.subr.bf16.mxu0 %v582
    %727 = vmatpush1.bf16.msra.mxu0 %v581
    %728 = vmatprep.subr.bf16.mxu0 %v587
    %729 = vmatpush1.bf16.msra.mxu0 %v586
    %730 = vmatprep.mubr.bf16.mxu0 %v214
    %731 = vmatmul.mubr.bf16.gmra.mrb[0].mxu0 %v213
    %v732 = vpop.f32.mrb[0].mxu0
    %v733 = vadd.f32 %v176, %v732
    %v734 = vpop.f32.mrb[0].mxu0
    %v735 = vadd.f32 %v176, %v734
    %v736 = vpop.f32.mrb[0].mxu0
    %v737 = vadd.f32 %v181, %v736
    %v738 = vpop.f32.mrb[0].mxu0
    %v739 = vadd.f32 %v181, %v738
    %740 = vmatprep.mubr.bf16.mxu0 %v217
    %741 = vmatmul.mubr.bf16.gmra.mrb[0].mxu0 %v216
    %v742 = vpop.f32.mrb[0].mxu0
    %v743 = vadd.f32 %v186, %v742
    %v744 = vpop.f32.mrb[0].mxu0
    %v745 = vadd.f32 %v186, %v744
    %v746 = vpop.f32.mrb[0].mxu0
    %v747 = vadd.f32 %v191, %v746
    %v748 = vpop.f32.mrb[0].mxu0
    %v749 = vadd.f32 %v191, %v748
    %750 = vdwg.mxu0
    %751 = vmatprep.subr.bf16.mxu0 %v592
    %752 = vmatpush1.bf16.msra.mxu0 %v591
    %753 = vmatprep.subr.bf16.mxu0 %v597
    %754 = vmatpush1.bf16.msra.mxu0 %v596
    %755 = vmatprep.subr.bf16.mxu0 0
    %756 = vmatpush1.bf16.msra.mxu0 0
    %757 = vmatprep.subr.bf16.mxu0 0
    %758 = vmatpush1.bf16.msra.mxu0 0
    %759 = vmatprep.subr.bf16.mxu0 0
    %760 = vmatpush1.bf16.msra.mxu0 0
    %761 = vmatprep.subr.bf16.mxu0 0
    %762 = vmatpush1.bf16.msra.mxu0 0
    %763 = vmatprep.subr.bf16.mxu0 0
    %764 = vmatpush1.bf16.msra.mxu0 0
    %765 = vmatprep.subr.bf16.mxu0 0
    %766 = vmatpush1.bf16.msra.mxu0 0
    %767 = vmatprep.subr.bf16.mxu0 0
    %768 = vmatpush1.bf16.msra.mxu0 0
    %769 = vmatprep.subr.bf16.mxu0 0
    %770 = vmatpush1.bf16.msra.mxu0 0
    %771 = vmatprep.subr.bf16.mxu0 0
    %772 = vmatpush1.bf16.msra.mxu0 0
    %773 = vmatprep.subr.bf16.mxu0 0
    %774 = vmatpush1.bf16.msra.mxu0 0
    %775 = vmatprep.subr.bf16.mxu0 0
    %776 = vmatpush1.bf16.msra.mxu0 0
    %777 = vmatprep.subr.bf16.mxu0 0
    %778 = vmatpush1.bf16.msra.mxu0 0
    %779 = vmatprep.subr.bf16.mxu0 0
    %780 = vmatpush1.bf16.msra.mxu0 0
    %781 = vmatprep.subr.bf16.mxu0 0
    %782 = vmatpush1.bf16.msra.mxu0 0
    %783 = vmatprep.mubr.bf16.mxu0 0
    %784 = vmatmul.mubr.bf16.gmra.mrb[0].mxu0 %v693
    %v785 = vpop.f32.mrb[0].mxu0
    %v786 = vadd.f32 %v733, %v785
    %v787 = vpop.f32.mrb[0].mxu0
    %v788 = vadd.f32 %v735, %v787
    %v789 = vpop.f32.mrb[0].mxu0
    %v790 = vadd.f32 %v737, %v789
    %v791 = vpop.f32.mrb[0].mxu0
    %v792 = vadd.f32 %v739, %v791
    %793 = vmatprep.mubr.bf16.mxu0 0
    %794 = vmatmul.mubr.bf16.gmra.mrb[0].mxu0 %v696
    %v795 = vpop.f32.mrb[0].mxu0
    %v796 = vadd.f32 %v743, %v795
    %v797 = vpop.f32.mrb[0].mxu0
    %v798 = vadd.f32 %v745, %v797
    %v799 = vpop.f32.mrb[0].mxu0
    %v800 = vadd.f32 %v747, %v799
    %v801 = vpop.f32.mrb[0].mxu0
    %v802 = vadd.f32 %v749, %v801
    %803 = vdwg.mxu0
    %804 = vmatprep.subr.bf16.mxu0 %v514
    %805 = vmatpush1.bf16.msra.mxu0 %v513
    %806 = vmatprep.subr.bf16.mxu0 %v519
    %807 = vmatpush1.bf16.msra.mxu0 %v518
    %808 = vmatprep.subr.bf16.mxu0 %v524
    %809 = vmatpush1.bf16.msra.mxu0 %v523
    %810 = vmatprep.subr.bf16.mxu0 %v529
    %811 = vmatpush1.bf16.msra.mxu0 %v528
    %812 = vmatprep.subr.bf16.mxu0 %v534
    %813 = vmatpush1.bf16.msra.mxu0 %v533
    %814 = vmatprep.subr.bf16.mxu0 %v539
    %815 = vmatpush1.bf16.msra.mxu0 %v538
    %816 = vmatprep.subr.bf16.mxu0 %v544
    %817 = vmatpush1.bf16.msra.mxu0 %v543
    %818 = vmatprep.subr.bf16.mxu0 %v549
    %819 = vmatpush1.bf16.msra.mxu0 %v548
    %820 = vmatprep.subr.bf16.mxu0 %v554
    %821 = vmatpush1.bf16.msra.mxu0 %v553
    %822 = vmatprep.subr.bf16.mxu0 %v559
    %823 = vmatpush1.bf16.msra.mxu0 %v558
    %824 = vmatprep.subr.bf16.mxu0 %v564
    %825 = vmatpush1.bf16.msra.mxu0 %v563
    %826 = vmatprep.subr.bf16.mxu0 %v569
    %827 = vmatpush1.bf16.msra.mxu0 %v568
    %828 = vmatprep.subr.bf16.mxu0 %v574
    %829 = vmatpush1.bf16.msra.mxu0 %v573
    %830 = vmatprep.subr.bf16.mxu0 %v579
    %831 = vmatpush1.bf16.msra.mxu0 %v578
    %832 = vmatprep.subr.bf16.mxu0 %v584
    %833 = vmatpush1.bf16.msra.mxu0 %v583
    %834 = vmatprep.subr.bf16.mxu0 %v589
    %835 = vmatpush1.bf16.msra.mxu0 %v588
    %836 = vmatprep.mubr.bf16.mxu0 %v214
    %837 = vmatmul.mubr.bf16.gmra.mrb[0].mxu0 %v213
    %v838 = vpop.f32.mrb[0].mxu0
    %v839 = vadd.f32 %v176, %v838
    %v840 = vpop.f32.mrb[0].mxu0
    %v841 = vadd.f32 %v176, %v840
    %v842 = vpop.f32.mrb[0].mxu0
    %v843 = vadd.f32 %v181, %v842
    %v844 = vpop.f32.mrb[0].mxu0
    %v845 = vadd.f32 %v181, %v844
    %846 = vmatprep.mubr.bf16.mxu0 %v217
    %847 = vmatmul.mubr.bf16.gmra.mrb[0].mxu0 %v216
    %v848 = vpop.f32.mrb[0].mxu0
    %v849 = vadd.f32 %v186, %v848
    %v850 = vpop.f32.mrb[0].mxu0
    %v851 = vadd.f32 %v186, %v850
    %v852 = vpop.f32.mrb[0].mxu0
    %v853 = vadd.f32 %v191, %v852
    %v854 = vpop.f32.mrb[0].mxu0
    %v855 = vadd.f32 %v191, %v854
    %856 = vdwg.mxu0
    %857 = vmatprep.subr.bf16.mxu0 %v594
    %858 = vmatpush1.bf16.msra.mxu0 %v593
    %859 = vmatprep.subr.bf16.mxu0 %v599
    %860 = vmatpush1.bf16.msra.mxu0 %v598
    %861 = vmatprep.subr.bf16.mxu0 0
    %862 = vmatpush1.bf16.msra.mxu0 0
    %863 = vmatprep.subr.bf16.mxu0 0
    %864 = vmatpush1.bf16.msra.mxu0 0
    %865 = vmatprep.subr.bf16.mxu0 0
    %866 = vmatpush1.bf16.msra.mxu0 0
    %867 = vmatprep.subr.bf16.mxu0 0
    %868 = vmatpush1.bf16.msra.mxu0 0
    %869 = vmatprep.subr.bf16.mxu0 0
    %870 = vmatpush1.bf16.msra.mxu0 0
    %871 = vmatprep.subr.bf16.mxu0 0
    %872 = vmatpush1.bf16.msra.mxu0 0
    %873 = vmatprep.subr.bf16.mxu0 0
    %874 = vmatpush1.bf16.msra.mxu0 0
    %875 = vmatprep.subr.bf16.mxu0 0
    %876 = vmatpush1.bf16.msra.mxu0 0
    %877 = vmatprep.subr.bf16.mxu0 0
    %878 = vmatpush1.bf16.msra.mxu0 0
    %879 = vmatprep.subr.bf16.mxu0 0
    %880 = vmatpush1.bf16.msra.mxu0 0
    %881 = vmatprep.subr.bf16.mxu0 0
    %882 = vmatpush1.bf16.msra.mxu0 0
    %883 = vmatprep.subr.bf16.mxu0 0
    %884 = vmatpush1.bf16.msra.mxu0 0
    %885 = vmatprep.subr.bf16.mxu0 0
    %886 = vmatpush1.bf16.msra.mxu0 0
    %887 = vmatprep.subr.bf16.mxu0 0
    %888 = vmatpush1.bf16.msra.mxu0 0
    %889 = vmatprep.mubr.bf16.mxu0 0
    %890 = vmatmul.mubr.bf16.gmra.mrb[0].mxu0 %v693
    %v891 = vpop.f32.mrb[0].mxu0
    %v892 = vadd.f32 %v839, %v891
    %v893 = vpop.f32.mrb[0].mxu0
    %v894 = vadd.f32 %v841, %v893
    %v895 = vpop.f32.mrb[0].mxu0
    %v896 = vadd.f32 %v843, %v895
    %v897 = vpop.f32.mrb[0].mxu0
    %v898 = vadd.f32 %v845, %v897
    %899 = vmatprep.mubr.bf16.mxu0 0
    %900 = vmatmul.mubr.bf16.gmra.mrb[0].mxu0 %v696
    %v901 = vpop.f32.mrb[0].mxu0
    %v902 = vadd.f32 %v849, %v901
    %v903 = vpop.f32.mrb[0].mxu0
    %v904 = vadd.f32 %v851, %v903
    %v905 = vpop.f32.mrb[0].mxu0
    %v906 = vadd.f32 %v853, %v905
    %v907 = vpop.f32.mrb[0].mxu0
    %v908 = vadd.f32 %v855, %v907
    %909 = vdwg.mxu0
    %910 = vmatprep.subr.bf16.mxu0 0
    %911 = vmatpush1.bf16.msra.mxu0 %v515
    %912 = vmatprep.subr.bf16.mxu0 0
    %913 = vmatpush1.bf16.msra.mxu0 %v520
    %914 = vmatprep.subr.bf16.mxu0 0
    %915 = vmatpush1.bf16.msra.mxu0 %v525
    %916 = vmatprep.subr.bf16.mxu0 0
    %917 = vmatpush1.bf16.msra.mxu0 %v530
    %918 = vmatprep.subr.bf16.mxu0 0
    %919 = vmatpush1.bf16.msra.mxu0 %v535
    %920 = vmatprep.subr.bf16.mxu0 0
    %921 = vmatpush1.bf16.msra.mxu0 %v540
    %922 = vmatprep.subr.bf16.mxu0 0
    %923 = vmatpush1.bf16.msra.mxu0 %v545
    %924 = vmatprep.subr.bf16.mxu0 0
    %925 = vmatpush1.bf16.msra.mxu0 %v550
    %926 = vmatprep.subr.bf16.mxu0 0
    %927 = vmatpush1.bf16.msra.mxu0 %v555
    %928 = vmatprep.subr.bf16.mxu0 0
    %929 = vmatpush1.bf16.msra.mxu0 %v560
    %930 = vmatprep.subr.bf16.mxu0 0
    %931 = vmatpush1.bf16.msra.mxu0 %v565
    %932 = vmatprep.subr.bf16.mxu0 0
    %933 = vmatpush1.bf16.msra.mxu0 %v570
    %934 = vmatprep.subr.bf16.mxu0 0
    %935 = vmatpush1.bf16.msra.mxu0 %v575
    %936 = vmatprep.subr.bf16.mxu0 0
    %937 = vmatpush1.bf16.msra.mxu0 %v580
    %938 = vmatprep.subr.bf16.mxu0 0
    %939 = vmatpush1.bf16.msra.mxu0 %v585
    %940 = vmatprep.subr.bf16.mxu0 0
    %941 = vmatpush1.bf16.msra.mxu0 %v590
    %942 = vmatprep.mubr.bf16.mxu0 %v214
    %943 = vmatmul.mubr.bf16.gmra.mrb[0].mxu0 %v213
    %v944 = vpop.f32.mrb[0].mxu0
    %v945 = vadd.f32 %v176, %v944
    %v946 = vpop.f32.mrb[0].mxu0
    %v947 = vpop.f32.mrb[0].mxu0
    %v948 = vadd.f32 %v181, %v947
    %v949 = vpop.f32.mrb[0].mxu0
    %950 = vmatprep.mubr.bf16.mxu0 %v217
    %951 = vmatmul.mubr.bf16.gmra.mrb[0].mxu0 %v216
    %v952 = vpop.f32.mrb[0].mxu0
    %v953 = vadd.f32 %v186, %v952
    %v954 = vpop.f32.mrb[0].mxu0
    %v955 = vpop.f32.mrb[0].mxu0
    %v956 = vadd.f32 %v191, %v955
    %v957 = vpop.f32.mrb[0].mxu0
    %958 = vdwg.mxu0
    %959 = vmatprep.subr.bf16.mxu0 0
    %960 = vmatpush1.bf16.msra.mxu0 %v595
    %961 = vmatprep.subr.bf16.mxu0 0
    %962 = vmatpush1.bf16.msra.mxu0 %v600
    %963 = vmatprep.subr.bf16.mxu0 0
    %964 = vmatpush1.bf16.msra.mxu0 0
    %965 = vmatprep.subr.bf16.mxu0 0
    %966 = vmatpush1.bf16.msra.mxu0 0
    %967 = vmatprep.subr.bf16.mxu0 0
    %968 = vmatpush1.bf16.msra.mxu0 0
    %969 = vmatprep.subr.bf16.mxu0 0
    %970 = vmatpush1.bf16.msra.mxu0 0
    %971 = vmatprep.subr.bf16.mxu0 0
    %972 = vmatpush1.bf16.msra.mxu0 0
    %973 = vmatprep.subr.bf16.mxu0 0
    %974 = vmatpush1.bf16.msra.mxu0 0
    %975 = vmatprep.subr.bf16.mxu0 0
    %976 = vmatpush1.bf16.msra.mxu0 0
    %977 = vmatprep.subr.bf16.mxu0 0
    %978 = vmatpush1.bf16.msra.mxu0 0
    %979 = vmatprep.subr.bf16.mxu0 0
    %980 = vmatpush1.bf16.msra.mxu0 0
    %981 = vmatprep.subr.bf16.mxu0 0
    %982 = vmatpush1.bf16.msra.mxu0 0
    %983 = vmatprep.subr.bf16.mxu0 0
    %984 = vmatpush1.bf16.msra.mxu0 0
    %985 = vmatprep.subr.bf16.mxu0 0
    %986 = vmatpush1.bf16.msra.mxu0 0
    %987 = vmatprep.subr.bf16.mxu0 0
    %988 = vmatpush1.bf16.msra.mxu0 0
    %989 = vmatprep.subr.bf16.mxu0 0
    %990 = vmatpush1.bf16.msra.mxu0 0
    %991 = vmatprep.mubr.bf16.mxu0 0
    %992 = vmatmul.mubr.bf16.gmra.mrb[0].mxu0 %v693
    %v993 = vpop.f32.mrb[0].mxu0
    %v994 = vadd.f32 %v945, %v993
    %v995 = vpop.f32.mrb[0].mxu0
    %v996 = vpop.f32.mrb[0].mxu0
    %v997 = vadd.f32 %v948, %v996
    %v998 = vpop.f32.mrb[0].mxu0
    %999 = vmatprep.mubr.bf16.mxu0 0
    %1000 = vmatmul.mubr.bf16.gmra.mrb[0].mxu0 %v696
    %v1001 = vpop.f32.mrb[0].mxu0
    %v1002 = vadd.f32 %v953, %v1001
    %v1003 = vpop.f32.mrb[0].mxu0
    %v1004 = vpop.f32.mrb[0].mxu0
    %v1005 = vadd.f32 %v956, %v1004
    %v1006 = vpop.f32.mrb[0].mxu0
    %1007 = vdwg.mxu0
    %v1008 = vmax.f32 %v786, 0.0
    %v1009 = vmax.f32 %v788, 0.0
    %v1010 = vmax.f32 %v892, 0.0
    %v1011 = vmax.f32 %v894, 0.0
    %v1012 = vmax.f32 %v994, 0.0
    %v1013 = vmax.f32 %v790, 0.0
    %v1014 = vmax.f32 %v792, 0.0
    %v1015 = vmax.f32 %v896, 0.0
    %v1016 = vmax.f32 %v898, 0.0
    %v1017 = vmax.f32 %v997, 0.0
    %v1018 = vmax.f32 %v796, 0.0
    %v1019 = vmax.f32 %v798, 0.0
    %v1020 = vmax.f32 %v902, 0.0
    %v1021 = vmax.f32 %v904, 0.0
    %v1022 = vmax.f32 %v1002, 0.0
    %v1023 = vmax.f32 %v800, 0.0
    %v1024 = vmax.f32 %v802, 0.0
    %v1025 = vmax.f32 %v906, 0.0
    %v1026 = vmax.f32 %v908, 0.0
    %v1027 = vmax.f32 %v1005, 0.0
    %v1028 = vld [vmem:[%s3] sm:$0xf]
    %v1029 = vld [vmem:[%s3 + $0x4] sm:$0xf]
    %v1030 = vpack.c.bf16 %v1013, %v1008
    %v1031 = vpack.c.bf16 %v1014, %v1009
    %v1032 = vpack.c.bf16 %v1015, %v1010
    %v1033 = vpack.c.bf16 %v1016, %v1011
    %v1034 = vpack.c.bf16 %v1017, %v1012
    %v1035 = vpack.c.bf16 %v1023, %v1018
    %v1036 = vpack.c.bf16 %v1024, %v1019
    %v1037 = vpack.c.bf16 %v1025, %v1020
    %v1038 = vpack.c.bf16 %v1026, %v1021
    %v1039 = vpack.c.bf16 %v1027, %v1022
    %v1040 = vld [vmem:[%s4] sm:$0xff]
    %v1041 = vld [vmem:[%s4 + $0x8] sm:$0x7f]
    %1043 = vset.pattern.permute.xlu0 0
    %1044 = vperm.xlu0 %1043, %v1040
    %v1045 = vpop.permute.xlu0 %1044
    %1048 = vset.pattern.permute.xlu0 0
    %1049 = vperm.xlu0 %1048, %v1041
    %v1050 = vpop.permute.xlu0 %1049
    %v1054 = vunpack.c.l.b16 %v1028
    %v1055 = vunpack.c.l.b16 %v1029
    %v1056 = vpack.c.b16 %v1055, %v1054
    %v1058 = vsel %vm691, %v1056, 0
    %1060 = vmatprep.subr.bf16.mxu0 %v1031
    %1061 = vmatpush1.bf16.msra.mxu0 %v1030
    %1062 = vmatprep.subr.bf16.mxu0 %v1036
    %1063 = vmatpush1.bf16.msra.mxu0 %v1035
    %1064 = vmatprep.subr.bf16.mxu0 0
    %1065 = vmatpush1.bf16.msra.mxu0 0
    %1066 = vmatprep.subr.bf16.mxu0 0
    %1067 = vmatpush1.bf16.msra.mxu0 0
    %1068 = vmatprep.subr.bf16.mxu0 0
    %1069 = vmatpush1.bf16.msra.mxu0 0
    %1070 = vmatprep.subr.bf16.mxu0 0
    %1071 = vmatpush1.bf16.msra.mxu0 0
    %1072 = vmatprep.subr.bf16.mxu0 0
    %1073 = vmatpush1.bf16.msra.mxu0 0
    %1074 = vmatprep.subr.bf16.mxu0 0
    %1075 = vmatpush1.bf16.msra.mxu0 0
    %1076 = vmatprep.subr.bf16.mxu0 0
    %1077 = vmatpush1.bf16.msra.mxu0 0
    %1078 = vmatprep.subr.bf16.mxu0 0
    %1079 = vmatpush1.bf16.msra.mxu0 0
    %1080 = vmatprep.subr.bf16.mxu0 0
    %1081 = vmatpush1.bf16.msra.mxu0 0
    %1082 = vmatprep.subr.bf16.mxu0 0
    %1083 = vmatpush1.bf16.msra.mxu0 0
    %1084 = vmatprep.subr.bf16.mxu0 0
    %1085 = vmatpush1.bf16.msra.mxu0 0
    %1086 = vmatprep.subr.bf16.mxu0 0
    %1087 = vmatpush1.bf16.msra.mxu0 0
    %1088 = vmatprep.subr.bf16.mxu0 0
    %1089 = vmatpush1.bf16.msra.mxu0 0
    %1090 = vmatprep.subr.bf16.mxu0 0
    %1091 = vmatpush1.bf16.msra.mxu0 0
    %1092 = vmatprep.mubr.bf16.mxu0 0
    %1093 = vmatmul.mubr.bf16.gmra.mrb[0].mxu0 %v1058
    %v1094 = vpop.f32.mrb[0].mxu0
    %v1095 = vadd.f32 %v1045, %v1094
    %v1096 = vpop.f32.mrb[0].mxu0
    %v1097 = vadd.f32 %v1045, %v1096
    %v1098 = vpop.f32.mrb[0].mxu0
    %v1099 = vadd.f32 %v1050, %v1098
    %v1100 = vpop.f32.mrb[0].mxu0
    %v1101 = vadd.f32 %v1050, %v1100
    %1102 = vdwg.mxu0
    %1103 = vmatprep.subr.bf16.mxu0 %v1033
    %1104 = vmatpush1.bf16.msra.mxu0 %v1032
    %1105 = vmatprep.subr.bf16.mxu0 %v1038
    %1106 = vmatpush1.bf16.msra.mxu0 %v1037
    %1107 = vmatprep.subr.bf16.mxu0 0
    %1108 = vmatpush1.bf16.msra.mxu0 0
    %1109 = vmatprep.subr.bf16.mxu0 0
    %1110 = vmatpush1.bf16.msra.mxu0 0
    %1111 = vmatprep.subr.bf16.mxu0 0
    %1112 = vmatpush1.bf16.msra.mxu0 0
    %1113 = vmatprep.subr.bf16.mxu0 0
    %1114 = vmatpush1.bf16.msra.mxu0 0
    %1115 = vmatprep.subr.bf16.mxu0 0
    %1116 = vmatpush1.bf16.msra.mxu0 0
    %1117 = vmatprep.subr.bf16.mxu0 0
    %1118 = vmatpush1.bf16.msra.mxu0 0
    %1119 = vmatprep.subr.bf16.mxu0 0
    %1120 = vmatpush1.bf16.msra.mxu0 0
    %1121 = vmatprep.subr.bf16.mxu0 0
    %1122 = vmatpush1.bf16.msra.mxu0 0
    %1123 = vmatprep.subr.bf16.mxu0 0
    %1124 = vmatpush1.bf16.msra.mxu0 0
    %1125 = vmatprep.subr.bf16.mxu0 0
    %1126 = vmatpush1.bf16.msra.mxu0 0
    %1127 = vmatprep.subr.bf16.mxu0 0
    %1128 = vmatpush1.bf16.msra.mxu0 0
    %1129 = vmatprep.subr.bf16.mxu0 0
    %1130 = vmatpush1.bf16.msra.mxu0 0
    %1131 = vmatprep.subr.bf16.mxu0 0
    %1132 = vmatpush1.bf16.msra.mxu0 0
    %1133 = vmatprep.subr.bf16.mxu0 0
    %1134 = vmatpush1.bf16.msra.mxu0 0
    %1135 = vmatprep.mubr.bf16.mxu0 0
    %1136 = vmatmul.mubr.bf16.gmra.mrb[0].mxu0 %v1058
    %v1137 = vpop.f32.mrb[0].mxu0
    %v1138 = vadd.f32 %v1045, %v1137
    %v1139 = vpop.f32.mrb[0].mxu0
    %v1140 = vadd.f32 %v1045, %v1139
    %v1141 = vpop.f32.mrb[0].mxu0
    %v1142 = vadd.f32 %v1050, %v1141
    %v1143 = vpop.f32.mrb[0].mxu0
    %v1144 = vadd.f32 %v1050, %v1143
    %1145 = vdwg.mxu0
    %1146 = vmatprep.subr.bf16.mxu0 0
    %1147 = vmatpush1.bf16.msra.mxu0 %v1034
    %1148 = vmatprep.subr.bf16.mxu0 0
    %1149 = vmatpush1.bf16.msra.mxu0 %v1039
    %1150 = vmatprep.subr.bf16.mxu0 0
    %1151 = vmatpush1.bf16.msra.mxu0 0
    %1152 = vmatprep.subr.bf16.mxu0 0
    %1153 = vmatpush1.bf16.msra.mxu0 0
    %1154 = vmatprep.subr.bf16.mxu0 0
    %1155 = vmatpush1.bf16.msra.mxu0 0
    %1156 = vmatprep.subr.bf16.mxu0 0
    %1157 = vmatpush1.bf16.msra.mxu0 0
    %1158 = vmatprep.subr.bf16.mxu0 0
    %1159 = vmatpush1.bf16.msra.mxu0 0
    %1160 = vmatprep.subr.bf16.mxu0 0
    %1161 = vmatpush1.bf16.msra.mxu0 0
    %1162 = vmatprep.subr.bf16.mxu0 0
    %1163 = vmatpush1.bf16.msra.mxu0 0
    %1164 = vmatprep.subr.bf16.mxu0 0
    %1165 = vmatpush1.bf16.msra.mxu0 0
    %1166 = vmatprep.subr.bf16.mxu0 0
    %1167 = vmatpush1.bf16.msra.mxu0 0
    %1168 = vmatprep.subr.bf16.mxu0 0
    %1169 = vmatpush1.bf16.msra.mxu0 0
    %1170 = vmatprep.subr.bf16.mxu0 0
    %1171 = vmatpush1.bf16.msra.mxu0 0
    %1172 = vmatprep.subr.bf16.mxu0 0
    %1173 = vmatpush1.bf16.msra.mxu0 0
    %1174 = vmatprep.subr.bf16.mxu0 0
    %1175 = vmatpush1.bf16.msra.mxu0 0
    %1176 = vmatprep.subr.bf16.mxu0 0
    %1177 = vmatpush1.bf16.msra.mxu0 0
    %1178 = vmatprep.mubr.bf16.mxu0 0
    %1179 = vmatmul.mubr.bf16.gmra.mrb[0].mxu0 %v1058
    %v1180 = vpop.f32.mrb[0].mxu0
    %v1181 = vadd.f32 %v1045, %v1180
    %v1182 = vpop.f32.mrb[0].mxu0
    %v1183 = vpop.f32.mrb[0].mxu0
    %v1184 = vadd.f32 %v1050, %v1183
    %v1185 = vpop.f32.mrb[0].mxu0
    %1186 = vdwg.mxu0
    %v1187 = vmin.f32 %v1099, 4.1351666
    %v1188 = vmin.f32 %v1101, 4.1351666
    %v1189 = vmin.f32 %v1142, 4.1351666
    %v1190 = vmin.f32 %v1144, 4.1351666
    %v1191 = vmin.f32 %v1184, 4.1351666
    %v1192 = vld [vmem:[#allocation5] sm:$0x7]
    %v1193 = vld [vmem:[#allocation5 + $0x8] sm:$0x7]
    %v1194 = vld [vmem:[#allocation5 + $0x10] sm:$0x7]
    %v1195 = vld [vmem:[#allocation5 + $0x18] sm:$0x7]
    %v1196 = vld [vmem:[#allocation5 + $0x20] sm:$0x7]
    %v1197 = vld [vmem:[#allocation5] sm:$0x38]
    %v1198 = vld [vmem:[#allocation5 + $0x8] sm:$0x38]
    %v1199 = vld [vmem:[#allocation5 + $0x10] sm:$0x38]
    %v1200 = vld [vmem:[#allocation5 + $0x18] sm:$0x38]
    %v1201 = vld [vmem:[#allocation5 + $0x20] sm:$0x38]
    %v1202 = vld [vmem:[#allocation5] sm:$0xc0]
    %v1203 = vld [vmem:[#allocation5 + $0x8] sm:$0xc0]
    %v1204 = vld [vmem:[#allocation5 + $0x10] sm:$0xc0]
    %v1205 = vld [vmem:[#allocation5 + $0x18] sm:$0xc0]
    %v1206 = vld [vmem:[#allocation5 + $0x20] sm:$0xc0]
    %v1207 = vld [vmem:[#allocation5 + $0x28] sm:$0x1]
    %v1208 = vld [vmem:[#allocation5 + $0x30] sm:$0x1]
    %v1209 = vld [vmem:[#allocation5 + $0x38] sm:$0x1]
    %v1210 = vld [vmem:[#allocation5 + $0x40] sm:$0x1]
    %v1211 = vld [vmem:[#allocation5 + $0x48] sm:$0x1]
    %v1212 = vld [vmem:[#allocation5 + $0x28] sm:$0xe]
    %v1213 = vld [vmem:[#allocation5 + $0x30] sm:$0xe]
    %v1214 = vld [vmem:[#allocation5 + $0x38] sm:$0xe]
    %v1215 = vld [vmem:[#allocation5 + $0x40] sm:$0xe]
    %v1216 = vld [vmem:[#allocation5 + $0x48] sm:$0xe]
    %vm1227 = vcmask 1044480
    %v1228 = vrot.slane %v1202, 3
    %v1229 = vrot.slane %v1207, 3
    %v1230 = vsel %vm1227, %v1228, %v1229
    %v1231 = vrot.slane %v1203, 3
    %v1232 = vrot.slane %v1208, 3
    %v1233 = vsel %vm1227, %v1231, %v1232
    %v1234 = vrot.slane %v1204, 3
    %v1235 = vrot.slane %v1209, 3
    %v1236 = vsel %vm1227, %v1234, %v1235
    %v1237 = vrot.slane %v1205, 3
    %v1238 = vrot.slane %v1210, 3
    %v1239 = vsel %vm1227, %v1237, %v1238
    %v1240 = vrot.slane %v1206, 3
    %v1241 = vrot.slane %v1211, 3
    %v1242 = vsel %vm1227, %v1240, %v1241
    %v1248 = vmul.f32 %v1095, %v1230
    %v1249 = vmul.f32 %v1097, %v1233
    %v1250 = vmul.f32 %v1138, %v1236
    %v1251 = vmul.f32 %v1140, %v1239
    %v1252 = vmul.f32 %v1181, %v1242
    %v1258 = vrot.slane %v1192, 5
    %v1259 = vrot.slane %v1193, 5
    %v1260 = vrot.slane %v1194, 5
    %v1261 = vrot.slane %v1195, 5
    %v1262 = vrot.slane %v1196, 5
    %v1268 = vadd.f32 %v1248, %v1258
    %v1269 = vadd.f32 %v1249, %v1259
    %v1270 = vadd.f32 %v1250, %v1260
    %v1271 = vadd.f32 %v1251, %v1261
    %v1272 = vadd.f32 %v1252, %v1262
    %v1278 = vrot.slane %v1212, 3
    %v1279 = vrot.slane %v1213, 3
    %v1280 = vrot.slane %v1214, 3
    %v1281 = vrot.slane %v1215, 3
    %v1282 = vrot.slane %v1216, 3
    %v1288 = vmul.f32 %v1095, %v1278
    %v1289 = vmul.f32 %v1097, %v1279
    %v1290 = vmul.f32 %v1138, %v1280
    %v1291 = vmul.f32 %v1140, %v1281
    %v1292 = vmul.f32 %v1181, %v1282
    %v1293 = vmul.f32 %v1099, %v1278
    %v1294 = vmul.f32 %v1101, %v1279
    %v1295 = vmul.f32 %v1142, %v1280
    %v1296 = vmul.f32 %v1144, %v1281
    %v1297 = vmul.f32 %v1184, %v1282
    %v1303 = vrot.slane %v1197, 5
    %v1304 = vrot.slane %v1198, 5
    %v1305 = vrot.slane %v1199, 5
    %v1306 = vrot.slane %v1200, 5
    %v1307 = vrot.slane %v1201, 5
    %v1313 = vadd.f32 %v1288, %v1303
    %v1314 = vadd.f32 %v1289, %v1304
    %v1315 = vadd.f32 %v1290, %v1305
    %v1316 = vadd.f32 %v1291, %v1306
    %v1317 = vadd.f32 %v1292, %v1307
    %v1318 = vadd.f32 %v1293, %v1303
    %v1319 = vadd.f32 %v1294, %v1304
    %v1320 = vadd.f32 %v1295, %v1305
    %v1321 = vadd.f32 %v1296, %v1306
    %v1322 = vadd.f32 %v1297, %v1307
    %v1323 = vmul.f32 %v1187, 1.442695
    %v1324 = vpow.pop %v1323
    %v1325 = vmul.f32 %v1188, 1.442695
    %v1326 = vpow.pop %v1325
    %v1327 = vmul.f32 %v1189, 1.442695
    %v1328 = vpow.pop %v1327
    %v1329 = vmul.f32 %v1190, 1.442695
    %v1330 = vpow.pop %v1329
    %v1331 = vmul.f32 %v1191, 1.442695
    %v1332 = vpow.pop %v1331
    %v1333 = vmul.f32 %v1324, 0.5
    %v1334 = vmul.f32 %v1326, 0.5
    %v1335 = vmul.f32 %v1328, 0.5
    %v1336 = vmul.f32 %v1330, 0.5
    %v1337 = vmul.f32 %v1332, 0.5
    %vm1338 = vcmask 1042432
    %v1339 = vrot.slane %v1202, 5
    %v1340 = vrot.slane %v1207, 5
    %v1341 = vsel %vm1338, %v1339, %v1340
    %v1342 = vrot.slane %v1203, 5
    %v1343 = vrot.slane %v1208, 5
    %v1344 = vsel %vm1338, %v1342, %v1343
    %v1345 = vrot.slane %v1204, 5
    %v1346 = vrot.slane %v1209, 5
    %v1347 = vsel %vm1338, %v1345, %v1346
    %v1348 = vrot.slane %v1205, 5
    %v1349 = vrot.slane %v1210, 5
    %v1350 = vsel %vm1338, %v1348, %v1349
    %v1351 = vrot.slane %v1206, 5
    %v1352 = vrot.slane %v1211, 5
    %v1353 = vsel %vm1338, %v1351, %v1352
    %v1359 = vmul.f32 %v1333, %v1341
    %v1360 = vmul.f32 %v1334, %v1344
    %v1361 = vmul.f32 %v1335, %v1347
    %v1362 = vmul.f32 %v1336, %v1350
    %v1363 = vmul.f32 %v1337, %v1353
    %v1364 = vrot.slane %v1212, 5
    %v1365 = vrot.slane %v1213, 5
    %v1366 = vrot.slane %v1214, 5
    %v1367 = vrot.slane %v1215, 5
    %v1368 = vrot.slane %v1216, 5
    %v1374 = vmul.f32 %v1333, %v1364
    %v1375 = vmul.f32 %v1334, %v1365
    %v1376 = vmul.f32 %v1335, %v1366
    %v1377 = vmul.f32 %v1336, %v1367
    %v1378 = vmul.f32 %v1337, %v1368
    %v1384 = vrot.slane %v1359, 6
    %v1385 = vrot.slane %v1360, 6
    %v1386 = vrot.slane %v1361, 6
    %v1387 = vrot.slane %v1362, 6
    %v1388 = vrot.slane %v1363, 6
    %v1394 = vsub.f32 %v1268, %v1384
    %v1395 = vsub.f32 %v1269, %v1385
    %v1396 = vsub.f32 %v1270, %v1386
    %v1397 = vsub.f32 %v1271, %v1387
    %v1398 = vsub.f32 %v1272, %v1388
    %v1399 = vmax.f32 %v1394, 0.0
    %v1400 = vmax.f32 %v1395, 0.0
    %v1401 = vmax.f32 %v1396, 0.0
    %v1402 = vmax.f32 %v1397, 0.0
    %v1403 = vmax.f32 %v1398, 0.0
    %v1404 = vmin.f32 %v1399, 64.0
    %v1405 = vmin.f32 %v1400, 64.0
    %v1406 = vmin.f32 %v1401, 64.0
    %v1407 = vmin.f32 %v1402, 64.0
    %v1408 = vmin.f32 %v1403, 64.0
    %v1414 = vrot.slane %v1404, 3
    %v1415 = vrot.slane %v1405, 3
    %v1416 = vrot.slane %v1406, 3
    %v1417 = vrot.slane %v1407, 3
    %v1418 = vrot.slane %v1408, 3
    %1424 = vst [vmem:[#allocation7] sm:$0x7] %v1414
    %1425 = vst [vmem:[#allocation7 + $0x8] sm:$0x7] %v1415
    %1426 = vst [vmem:[#allocation7 + $0x10] sm:$0x7] %v1416
    %1427 = vst [vmem:[#allocation7 + $0x18] sm:$0x7] %v1417
    %1428 = vst [vmem:[#allocation7 + $0x20] sm:$0x7] %v1418
    %v1434 = vrot.slane %v1374, 6
    %v1435 = vrot.slane %v1375, 6
    %v1436 = vrot.slane %v1376, 6
    %v1437 = vrot.slane %v1377, 6
    %v1438 = vrot.slane %v1378, 6
    %v1444 = vsub.f32 %v1313, %v1434
    %v1445 = vsub.f32 %v1314, %v1435
    %v1446 = vsub.f32 %v1315, %v1436
    %v1447 = vsub.f32 %v1316, %v1437
    %v1448 = vsub.f32 %v1317, %v1438
    %v1449 = vsub.f32 %v1318, %v1434
    %v1450 = vsub.f32 %v1319, %v1435
    %v1451 = vsub.f32 %v1320, %v1436
    %v1452 = vsub.f32 %v1321, %v1437
    %v1453 = vsub.f32 %v1322, %v1438
    %v1454 = vmax.f32 %v1444, 0.0
    %v1455 = vmax.f32 %v1445, 0.0
    %v1456 = vmax.f32 %v1446, 0.0
    %v1457 = vmax.f32 %v1447, 0.0
    %v1458 = vmax.f32 %v1448, 0.0
    %v1459 = vmax.f32 %v1449, 0.0
    %v1460 = vmax.f32 %v1450, 0.0
    %v1461 = vmax.f32 %v1451, 0.0
    %v1462 = vmax.f32 %v1452, 0.0
    %v1463 = vmax.f32 %v1453, 0.0
    %v1464 = vmin.f32 %v1454, 64.0
    %v1465 = vmin.f32 %v1455, 64.0
    %v1466 = vmin.f32 %v1456, 64.0
    %v1467 = vmin.f32 %v1457, 64.0
    %v1468 = vmin.f32 %v1458, 64.0
    %v1469 = vmin.f32 %v1459, 64.0
    %v1470 = vmin.f32 %v1460, 64.0
    %v1471 = vmin.f32 %v1461, 64.0
    %v1472 = vmin.f32 %v1462, 64.0
    %v1473 = vmin.f32 %v1463, 64.0
    %v1484 = vrot.slane %v1464, 3
    %v1485 = vrot.slane %v1469, 3
    %v1486 = vsel %vm1227, %v1484, %v1485
    %v1487 = vrot.slane %v1465, 3
    %v1488 = vrot.slane %v1470, 3
    %v1489 = vsel %vm1227, %v1487, %v1488
    %v1490 = vrot.slane %v1466, 3
    %v1491 = vrot.slane %v1471, 3
    %v1492 = vsel %vm1227, %v1490, %v1491
    %v1493 = vrot.slane %v1467, 3
    %v1494 = vrot.slane %v1472, 3
    %v1495 = vsel %vm1227, %v1493, %v1494
    %v1496 = vrot.slane %v1468, 3
    %v1497 = vrot.slane %v1473, 3
    %v1498 = vsel %vm1227, %v1496, %v1497
    %1504 = vst [vmem:[#allocation7] sm:$0x38] %v1486
    %1505 = vst [vmem:[#allocation7 + $0x8] sm:$0x38] %v1489
    %1506 = vst [vmem:[#allocation7 + $0x10] sm:$0x38] %v1492
    %1507 = vst [vmem:[#allocation7 + $0x18] sm:$0x38] %v1495
    %1508 = vst [vmem:[#allocation7 + $0x20] sm:$0x38] %v1498
    %v1509 = vadd.f32 %v1268, %v1384
    %v1510 = vadd.f32 %v1269, %v1385
    %v1511 = vadd.f32 %v1270, %v1386
    %v1512 = vadd.f32 %v1271, %v1387
    %v1513 = vadd.f32 %v1272, %v1388
    %v1514 = vmax.f32 %v1509, 0.0
    %v1515 = vmax.f32 %v1510, 0.0
    %v1516 = vmax.f32 %v1511, 0.0
    %v1517 = vmax.f32 %v1512, 0.0
    %v1518 = vmax.f32 %v1513, 0.0
    %v1519 = vmin.f32 %v1514, 64.0
    %v1520 = vmin.f32 %v1515, 64.0
    %v1521 = vmin.f32 %v1516, 64.0
    %v1522 = vmin.f32 %v1517, 64.0
    %v1523 = vmin.f32 %v1518, 64.0
    %v1529 = vrot.slane %v1519, 5
    %v1530 = vrot.slane %v1520, 5
    %v1531 = vrot.slane %v1521, 5
    %v1532 = vrot.slane %v1522, 5
    %v1533 = vrot.slane %v1523, 5
    %1539 = vst [vmem:[#allocation7] sm:$0xc0] %v1529
    %1540 = vst [vmem:[#allocation7 + $0x8] sm:$0xc0] %v1530
    %1541 = vst [vmem:[#allocation7 + $0x10] sm:$0xc0] %v1531
    %1542 = vst [vmem:[#allocation7 + $0x18] sm:$0xc0] %v1532
    %1543 = vst [vmem:[#allocation7 + $0x20] sm:$0xc0] %v1533
    %1544 = vst [vmem:[#allocation7 + $0x28] sm:$0x1] %v1529
    %1545 = vst [vmem:[#allocation7 + $0x30] sm:$0x1] %v1530
    %1546 = vst [vmem:[#allocation7 + $0x38] sm:$0x1] %v1531
    %1547 = vst [vmem:[#allocation7 + $0x40] sm:$0x1] %v1532
    %1548 = vst [vmem:[#allocation7 + $0x48] sm:$0x1] %v1533
    %v1549 = vadd.f32 %v1313, %v1434
    %v1550 = vadd.f32 %v1314, %v1435
    %v1551 = vadd.f32 %v1315, %v1436
    %v1552 = vadd.f32 %v1316, %v1437
    %v1553 = vadd.f32 %v1317, %v1438
    %v1554 = vadd.f32 %v1318, %v1434
    %v1555 = vadd.f32 %v1319, %v1435
    %v1556 = vadd.f32 %v1320, %v1436
    %v1557 = vadd.f32 %v1321, %v1437
    %v1558 = vadd.f32 %v1322, %v1438
    %v1559 = vmax.f32 %v1549, 0.0
    %v1560 = vmax.f32 %v1550, 0.0
    %v1561 = vmax.f32 %v1551, 0.0
    %v1562 = vmax.f32 %v1552, 0.0
    %v1563 = vmax.f32 %v1553, 0.0
    %v1564 = vmax.f32 %v1554, 0.0
    %v1565 = vmax.f32 %v1555, 0.0
    %v1566 = vmax.f32 %v1556, 0.0
    %v1567 = vmax.f32 %v1557, 0.0
    %v1568 = vmax.f32 %v1558, 0.0
    %v1569 = vmin.f32 %v1559, 64.0
    %v1570 = vmin.f32 %v1560, 64.0
    %v1571 = vmin.f32 %v1561, 64.0
    %v1572 = vmin.f32 %v1562, 64.0
    %v1573 = vmin.f32 %v1563, 64.0
    %v1574 = vmin.f32 %v1564, 64.0
    %v1575 = vmin.f32 %v1565, 64.0
    %v1576 = vmin.f32 %v1566, 64.0
    %v1577 = vmin.f32 %v1567, 64.0
    %v1578 = vmin.f32 %v1568, 64.0
    %v1589 = vrot.slane %v1569, 5
    %v1590 = vrot.slane %v1574, 5
    %v1591 = vsel %vm1338, %v1589, %v1590
    %v1592 = vrot.slane %v1570, 5
    %v1593 = vrot.slane %v1575, 5
    %v1594 = vsel %vm1338, %v1592, %v1593
    %v1595 = vrot.slane %v1571, 5
    %v1596 = vrot.slane %v1576, 5
    %v1597 = vsel %vm1338, %v1595, %v1596
    %v1598 = vrot.slane %v1572, 5
    %v1599 = vrot.slane %v1577, 5
    %v1600 = vsel %vm1338, %v1598, %v1599
    %v1601 = vrot.slane %v1573, 5
    %v1602 = vrot.slane %v1578, 5
    %v1603 = vsel %vm1338, %v1601, %v1602
    %1609 = vst [vmem:[#allocation7 + $0x28] sm:$0xe] %v1591
    %1610 = vst [vmem:[#allocation7 + $0x30] sm:$0xe] %v1594
    %1611 = vst [vmem:[#allocation7 + $0x38] sm:$0xe] %v1597
    %1612 = vst [vmem:[#allocation7 + $0x40] sm:$0xe] %v1600
    %1613 = vst [vmem:[#allocation7 + $0x48] sm:$0xe] %v1603
    %v1614 = vxor.u32 %v1095, 2147483648
    %v1615 = vxor.u32 %v1097, 2147483648
    %v1616 = vxor.u32 %v1138, 2147483648
    %v1617 = vxor.u32 %v1140, 2147483648
    %v1618 = vxor.u32 %v1181, 2147483648
    %v1619 = vmul.f32 %v1614, 1.442695
    %v1620 = vpow.pop %v1619
    %v1621 = vmul.f32 %v1615, 1.442695
    %v1622 = vpow.pop %v1621
    %v1623 = vmul.f32 %v1616, 1.442695
    %v1624 = vpow.pop %v1623
    %v1625 = vmul.f32 %v1617, 1.442695
    %v1626 = vpow.pop %v1625
    %v1627 = vmul.f32 %v1618, 1.442695
    %v1628 = vpow.pop %v1627
    %v1629 = vadd.f32 %v1620, 1.0
    %v1630 = vadd.f32 %v1622, 1.0
    %v1631 = vadd.f32 %v1624, 1.0
    %v1632 = vadd.f32 %v1626, 1.0
    %v1633 = vadd.f32 %v1628, 1.0
    %v1634 = vrcp.pop %v1629
    %v1635 = vmul.f32 1.0, %v1634
    %v1636 = vrcp.pop %v1630
    %v1637 = vmul.f32 1.0, %v1636
    %v1638 = vrcp.pop %v1631
    %v1639 = vmul.f32 1.0, %v1638
    %v1640 = vrcp.pop %v1632
    %v1641 = vmul.f32 1.0, %v1640
    %v1642 = vrcp.pop %v1633
    %v1643 = vmul.f32 1.0, %v1642
    %v1649 = vrot.slane %v1635, 4
    %v1650 = vrot.slane %v1637, 4
    %v1651 = vrot.slane %v1639, 4
    %v1652 = vrot.slane %v1641, 4
    %v1653 = vrot.slane %v1643, 4
    %1659 = vst [vmem:[#allocation7 + $0x28] sm:$0x70] %v1649
    %1660 = vst [vmem:[#allocation7 + $0x30] sm:$0x70] %v1650
    %1661 = vst [vmem:[#allocation7 + $0x38] sm:$0x70] %v1651
    %1662 = vst [vmem:[#allocation7 + $0x40] sm:$0x70] %v1652
    %1663 = vst [vmem:[#allocation7 + $0x48] sm:$0x70] %v1653
    // Predicated region
    $region34: #{tpu_custom_call.1} parent=1 // pred_check
      _
    $region35: #{tpu_custom_call.1} parent=1 // pred_check_branch
      %1665 = sbr.rel (0) target = $region37
    $region36: #{tpu_custom_call.1} parent=1 // pred_region
      %s1667 = ssub.s32 1280, 1280
      %1668 = vsyncadd [#allocation4], %s1667
      %s1669 = sshll.u32 [#allocation7], 4
      %s1670 = int_to_ptr.vmem [resolvable:$true] %s1669
      %1675 = dma.vmem_to_hbm [thread:$0]  %s1670, 1280, %s6, [#allocation4], 640, 640, 40
    $region37: #{tpu_custom_call.1} parent=1 // pred_fallthru
      _
    // Predicated region
    $region38: #{tpu_custom_call.1} parent=1 // pred_check
      _
    $region39: #{tpu_custom_call.1} parent=1 // pred_check_branch
      %1677 = sbr.rel (0) target = $region41
    $region40: #{tpu_custom_call.1} parent=1 // pred_region
      %1678 = dma.done [#allocation4], 1280
    $region41: #{tpu_custom_call.1} parent=1 // pred_fallthru
      _
    %1679 = vsyncpa [#allocation3], 1
    %1680 = vsyncpa [#allocation6], 1
    %1681 = vsyncpa [#allocation4], 1

</llo_original>
